<compile_context>
chip_gen: v5e
topology: v5e:2x2
jax: 0.10.0
libtpu: 0.0.40
codegen_flags: <defaults>
</compile_context>

<pallas_src>
import jax
import jax.numpy as jnp
from jax.experimental import pallas as pl
from jax.experimental.pallas import tpu as pltpu

SAMPLE_RATE = 16000
FRAME_SIZE = 400                  # n_fft == win_length
FRAME_RATE = 320                  # hop_length
NUM_MELS = 80
N_FREQS = FRAME_SIZE // 2 + 1     # 201 rfft bins
N_FREQS_PAD = 256                 # lane-aligned bin count (extra bins are exact zeros)
NUM_MELS_PAD = 128                # lane-dense output width (extra mels are exact zeros)
EPS = 1e-5


# ----------------------------- constants (plain JAX) -----------------------------

def _hamming_window(n):
    # torch.hamming_window(n) default: periodic=True, alpha=0.54, beta=0.46
    i = jnp.arange(n, dtype=jnp.float32)
    return (0.54 - 0.46 * jnp.cos(2.0 * jnp.pi * i / n)).astype(jnp.float32)


def _mel_filterbank(n_freqs, n_mels, sample_rate, f_min=0.0, f_max=None):
    # torchaudio.functional.melscale_fbanks defaults: mel_scale='htk', norm=None
    if f_max is None:
        f_max = sample_rate / 2.0

    def hz_to_mel(f):
        return 2595.0 * jnp.log10(1.0 + f / 700.0)

    def mel_to_hz(m):
        return 700.0 * (10.0 ** (m / 2595.0) - 1.0)

    all_freqs = jnp.linspace(0.0, sample_rate // 2, n_freqs)
    m_pts = jnp.linspace(hz_to_mel(f_min), hz_to_mel(f_max), n_mels + 2)
    f_pts = mel_to_hz(m_pts)
    f_diff = f_pts[1:] - f_pts[:-1]                       # (n_mels+1,)
    slopes = f_pts[None, :] - all_freqs[:, None]          # (n_freqs, n_mels+2)
    down = -slopes[:, :-2] / f_diff[:-1]
    up = slopes[:, 2:] / f_diff[1:]
    fb = jnp.maximum(0.0, jnp.minimum(down, up))
    return fb.astype(jnp.float32)                         # (n_freqs, n_mels)


def _dft_matrix_fused(frame_size, window):
    """Window-folded [Wcos | Wsin], zero-padded to (frame_size, 2*N_FREQS_PAD), bf16."""
    n = jnp.arange(frame_size, dtype=jnp.float32)[:, None]
    k = jnp.arange(N_FREQS, dtype=jnp.float32)[None, :]
    ang = 2.0 * jnp.pi * n * k / frame_size
    wc = window[:, None] * jnp.cos(ang)                    # (400, 201)
    ws = window[:, None] * (-jnp.sin(ang))                 # (400, 201)
    pad = N_FREQS_PAD - N_FREQS
    wc = jnp.pad(wc, ((0, 0), (0, pad)))                   # exact zero bins
    ws = jnp.pad(ws, ((0, 0), (0, pad)))
    return jnp.concatenate([wc, ws], axis=1).astype(jnp.bfloat16)   # (400, 512)


def _mel_filterbank_padded():
    fb = _mel_filterbank(N_FREQS, NUM_MELS, SAMPLE_RATE)   # (201, 80)
    return jnp.pad(fb, ((0, N_FREQS_PAD - N_FREQS),
                        (0, NUM_MELS_PAD - NUM_MELS)))     # (256, 128), zero padding


def _round_up(x, m):
    return (x + m - 1) // m * m


# --------------------------------- Pallas kernel ----------------------------------

def mstft_kernel(frames_ref, w_ref, fb_ref, out_ref):
    """frames_ref: (TILE, 400) bf16  -- raw (unwindowed) frames
       w_ref:      (400, 512) bf16   -- [window*cos | -window*sin], rfft bins padded to 256
       fb_ref:     (256, 128) f32    -- HTK mel filterbank, zero-padded
       out_ref:    (TILE, 128) f32   -- layer-normalised mel power (lanes >= 80 are zero)
    """
    x = frames_ref[...]
    # One fused MXU matmul for the real DFT: single bf16 pass, f32 accumulate.
    y = jnp.dot(x, w_ref[...], preferred_element_type=jnp.float32)     # (TILE, 512)
    re = y[:, :N_FREQS_PAD]
    im = y[:, N_FREQS_PAD:]
    power = re * re + im * im                                          # |STFT|^2 (power=2.0)
    mel = jnp.dot(power, fb_ref[...], preferred_element_type=jnp.float32)  # (TILE, 128)

    # layer_norm over the valid NUM_MELS lanes.  Padded lanes of `mel` are exact
    # zeros (fb padding), so the lane sum only sees valid bins; the variance uses
    # the centered (two-pass) form to avoid cancellation.
    inv_m = jnp.float32(1.0 / NUM_MELS)
    mean = jnp.sum(mel, axis=-1, keepdims=True) * inv_m
    lane = jax.lax.broadcasted_iota(jnp.int32, mel.shape, 1)
    centered = jnp.where(lane < NUM_MELS, mel - mean, 0.0)
    var = jnp.sum(centered * centered, axis=-1, keepdims=True) * inv_m
    out_ref[...] = (centered * jax.lax.rsqrt(var + EPS)).astype(out_ref.dtype)


def mstft_forward(waves, *, tile_rows=1024, out_dtype=jnp.float32):
    """waves: (B, L) float32 -> (B, T, NUM_MELS) layer-normalised mel spectrogram."""
    waves = waves.astype(jnp.float32)
    b, length = waves.shape
    t = (length - FRAME_SIZE) // FRAME_RATE + 1
    bt = b * t

    # Row tile: large (amortize ~0.35us per grid step) but capped so the grid keeps
    # >= 2 blocks for v7x's two TensorCores; multiple of 16 for bf16 sublane packing.
    half = -(-bt // 2)
    tile = min(int(tile_rows), _round_up(half, 16))
    tile = _round_up(max(tile, 16), 16)
    bt_pad = _round_up(bt, tile)
    grid = (bt_pad // tile,)

    # Framing: gather bt_pad frame rows directly from the bf16 waveform (no separate
    # jnp.pad copy); padded tail rows clamp to the last valid frame and are sliced off.
    waves_flat = waves.reshape(b * length).astype(jnp.bfloat16)
    rows = jnp.minimum(jnp.arange(bt_pad, dtype=jnp.int32), bt - 1)
    starts = (rows // t) * length + (rows % t) * FRAME_RATE
    frames2 = jax.vmap(
        lambda s: jax.lax.dynamic_slice(waves_flat, (s,), (FRAME_SIZE,)))(starts)
    # frames2: (bt_pad, 400) bf16

    w_fused = _dft_matrix_fused(FRAME_SIZE, _hamming_window(FRAME_SIZE))  # (400, 512) bf16
    fb = _mel_filterbank_padded()                                          # (256, 128) f32

    # VMEM budget with lane-padded shapes (frames 400->512 lanes, bins 256, mels 128).
    frame_lanes = _round_up(FRAME_SIZE, 128)
    vmem_bytes = (
        2 * tile * frame_lanes * 2                 # frame tile, bf16, double-buffered
        + 2 * tile * NUM_MELS_PAD * 4              # output tile, f32, double-buffered
        + 2 * FRAME_SIZE * 2 * N_FREQS_PAD * 2     # fused DFT matrix, bf16, 2 buffers
        + 2 * N_FREQS_PAD * NUM_MELS_PAD * 4       # mel fbank, f32, 2 buffers
        + tile * 2 * N_FREQS_PAD * 4               # y intermediate
        + tile * N_FREQS_PAD * 4                   # power
        + 3 * tile * NUM_MELS_PAD * 4              # mel / centered / store temp
        + (2 << 20)                                # headroom
    )
    vmem_limit = int(min(max(vmem_bytes, 16 << 20), 40 << 20))

    flops = bt_pad * (2 * FRAME_SIZE * 2 * N_FREQS_PAD
                      + 2 * N_FREQS_PAD * NUM_MELS_PAD
                      + 3 * N_FREQS_PAD + 8 * NUM_MELS_PAD)
    bytes_accessed = (bt_pad * FRAME_SIZE * 2
                      + bt_pad * NUM_MELS_PAD * 4
                      + FRAME_SIZE * 2 * N_FREQS_PAD * 2
                      + N_FREQS_PAD * NUM_MELS_PAD * 4)

    out = pl.pallas_call(
        mstft_kernel,
        out_shape=jax.ShapeDtypeStruct((bt_pad, NUM_MELS_PAD), out_dtype),
        grid_spec=pltpu.PrefetchScalarGridSpec(
            num_scalar_prefetch=0,
            grid=grid,
            in_specs=[
                pl.BlockSpec((tile, FRAME_SIZE), lambda i: (i, 0)),           # frame rows
                pl.BlockSpec((FRAME_SIZE, 2 * N_FREQS_PAD), lambda i: (0, 0)),  # fused rDFT (resident)
                pl.BlockSpec((N_FREQS_PAD, NUM_MELS_PAD), lambda i: (0, 0)),    # mel fbank (resident)
            ],
            out_specs=pl.BlockSpec((tile, NUM_MELS_PAD), lambda i: (i, 0)),
        ),
        compiler_params=pltpu.CompilerParams(
            dimension_semantics=("parallel",),
            vmem_limit_bytes=vmem_limit,
        ),
        cost_estimate=pl.CostEstimate(flops=flops, transcendentals=bt_pad,
                                      bytes_accessed=bytes_accessed),
    )(frames2, w_fused, fb)

    return out[:bt, :NUM_MELS].reshape(b, t, NUM_MELS)


# ------------------------------ pure-JAX reference --------------------------------

def reference_forward(waves):
    """Exact f32 mirror of the PyTorch forward: MelSpectrogram -> (b t f) -> layer_norm."""
    waves = waves.astype(jnp.float32)
    _, length = waves.shape
    t = (length - FRAME_SIZE) // FRAME_RATE + 1
    idx = (jnp.arange(t) * FRAME_RATE)[:, None] + jnp.arange(FRAME_SIZE)[None, :]
    frames = waves[:, idx]                                  # (B, T, 400)
    xw = frames * _hamming_window(FRAME_SIZE)[None, None, :]
    n = jnp.arange(FRAME_SIZE, dtype=jnp.float32)[:, None]
    k = jnp.arange(N_FREQS, dtype=jnp.float32)[None, :]
    ang = 2.0 * jnp.pi * n * k / FRAME_SIZE
    re = jnp.einsum("btf,fk->btk", xw, jnp.cos(ang),
                    precision=jax.lax.Precision.HIGHEST)
    im = jnp.einsum("btf,fk->btk", xw, jnp.sin(ang),
                    precision=jax.lax.Precision.HIGHEST)
    power = re * re + im * im
    fb = _mel_filterbank(N_FREQS, NUM_MELS, SAMPLE_RATE)
    mel = jnp.einsum("btk,km->btm", power, fb,
                     precision=jax.lax.Precision.HIGHEST)
    mean = jnp.mean(mel, axis=-1, keepdims=True)
    var = jnp.mean((mel - mean) ** 2, axis=-1, keepdims=True)
    return (mel - mean) / jnp.sqrt(var + EPS)


if __name__ == "__main__":
    key = jax.random.PRNGKey(0)

    B = 2
    WAVE_LEN = FRAME_SIZE + FRAME_RATE * 48          # -> T = 49 frames (small demo)
    waves = jax.random.normal(key, (B, WAVE_LEN), jnp.float32)

    out = mstft_forward(waves)                       # default tile; grid auto-caps to 2 blocks
    out = jax.block_until_ready(out)

    ref = reference_forward(waves)
    T = (WAVE_LEN - FRAME_SIZE) // FRAME_RATE + 1
    assert out.shape == (B, T, NUM_MELS), out.shape

    # The kernel uses bf16 MXU inputs (single-pass, per the perf review); the
    # layer-normalised outputs are O(1), so tolerances are set for bf16-level
    # error (typical ~5e-3, worst-element a few 1e-2).
    max_err = float(jnp.max(jnp.abs(out - ref)))
    rel_fro = float(jnp.linalg.norm((out - ref).ravel()) /
                    (jnp.linalg.norm(ref.ravel()) + 1e-12))
    assert max_err < 0.15, f"max abs err too large: {max_err}"
    assert rel_fro < 0.02, f"relative Frobenius err too large: {rel_fro}"

    print("KERNEL_OK")
</pallas_src>

<mosaic_0001>
module attributes {stable_mosaic.version = 11 : i64} {
  func.func @mstft_kernel(%arg0: i32, %arg1: memref<64x400xbf16, #tpu.memory_space<vmem>>, %arg2: memref<400x512xbf16, #tpu.memory_space<vmem>>, %arg3: memref<256x128xf32, #tpu.memory_space<vmem>>, %arg4: memref<64x128xf32, #tpu.memory_space<vmem>>) attributes {dimension_semantics = [#tpu.dimension_semantics<parallel>], iteration_bounds = array<i64: 2>, scalar_prefetch = 0 : i64, scratch_operands = 0 : i64, tpu.core_type = #tpu.core_type<tc>, window_params = [{transform_indices = @transform_0, window_bounds = array<i64: 64, 400>}, {pipeline_mode = #tpu.pipeline_mode<synchronous>, transform_indices = @transform_1, window_bounds = array<i64: 400, 512>}, {pipeline_mode = #tpu.pipeline_mode<synchronous>, transform_indices = @transform_2, window_bounds = array<i64: 256, 128>}, {transform_indices = @transform_3, window_bounds = array<i64: 64, 128>}]} {
    %c0 = arith.constant 0 : index
    %c0_0 = arith.constant 0 : index
    %0 = vector.load %arg1[%c0, %c0_0] : memref<64x400xbf16, #tpu.memory_space<vmem>>, vector<64x400xbf16>
    %c0_1 = arith.constant 0 : index
    %c0_2 = arith.constant 0 : index
    %1 = vector.load %arg2[%c0_1, %c0_2] : memref<400x512xbf16, #tpu.memory_space<vmem>>, vector<400x512xbf16>
    %cst = arith.constant dense<0.000000e+00> : vector<64x512xf32>
    %2 = tpu.matmul %0, %1, %cst {dimension_numbers = #tpu.dot_dimension_numbers<[1], [0], [0], [1], [0, 0, 1, 1], [], []>} : vector<64x400xbf16>, vector<400x512xbf16>, vector<64x512xf32> -> vector<64x512xf32>
    %3 = vector.extract_strided_slice %2 {offsets = [0, 0], sizes = [64, 256], strides = [1, 1]} : vector<64x512xf32> to vector<64x256xf32>
    %4 = vector.extract_strided_slice %2 {offsets = [0, 256], sizes = [64, 256], strides = [1, 1]} : vector<64x512xf32> to vector<64x256xf32>
    %5 = arith.mulf %3, %3 : vector<64x256xf32>
    %6 = arith.mulf %4, %4 : vector<64x256xf32>
    %7 = arith.addf %5, %6 : vector<64x256xf32>
    %c0_3 = arith.constant 0 : index
    %c0_4 = arith.constant 0 : index
    %8 = vector.load %arg3[%c0_3, %c0_4] : memref<256x128xf32, #tpu.memory_space<vmem>>, vector<256x128xf32>
    %cst_5 = arith.constant dense<0.000000e+00> : vector<64x128xf32>
    %9 = tpu.matmul %7, %8, %cst_5 {dimension_numbers = #tpu.dot_dimension_numbers<[1], [0], [0], [1], [0, 0, 1, 1], [], []>} : vector<64x256xf32>, vector<256x128xf32>, vector<64x128xf32> -> vector<64x128xf32>
    %cst_6 = arith.constant dense<0.000000e+00> : vector<64xf32>
    %10 = vector.multi_reduction <add>, %9, %cst_6 [1] : vector<64x128xf32> to vector<64xf32>
    %11 = vector.shape_cast %10 : vector<64xf32> to vector<64x1xf32>
    %cst_7 = arith.constant 1.250000e-02 : f32
    %12 = vector.broadcast %cst_7 : f32 to vector<64x1xf32>
    %13 = arith.mulf %11, %12 : vector<64x1xf32>
    %14 = tpu.iota {dimensions = array<i32: 1>} : vector<64x128xi32>
    %c80_i32 = arith.constant 80 : i32
    %15 = vector.broadcast %c80_i32 : i32 to vector<64x128xi32>
    %16 = arith.cmpi slt, %14, %15 : vector<64x128xi32>
    %17 = vector.broadcast %13 : vector<64x1xf32> to vector<64x128xf32>
    %18 = arith.subf %9, %17 : vector<64x128xf32>
    %cst_8 = arith.constant 0.000000e+00 : f32
    %19 = vector.broadcast %cst_8 : f32 to vector<64x128xf32>
    %20 = arith.select %16, %18, %19 : vector<64x128xi1>, vector<64x128xf32>
    %21 = arith.mulf %20, %20 : vector<64x128xf32>
    %cst_9 = arith.constant dense<0.000000e+00> : vector<64xf32>
    %22 = vector.multi_reduction <add>, %21, %cst_9 [1] : vector<64x128xf32> to vector<64xf32>
    %23 = vector.shape_cast %22 : vector<64xf32> to vector<64x1xf32>
    %cst_10 = arith.constant 1.250000e-02 : f32
    %24 = vector.broadcast %cst_10 : f32 to vector<64x1xf32>
    %25 = arith.mulf %23, %24 : vector<64x1xf32>
    %cst_11 = arith.constant 9.99999974E-6 : f32
    %26 = vector.broadcast %cst_11 : f32 to vector<64x1xf32>
    %27 = arith.addf %25, %26 : vector<64x1xf32>
    %28 = math.rsqrt %27 : vector<64x1xf32>
    %29 = vector.broadcast %28 : vector<64x1xf32> to vector<64x128xf32>
    %30 = arith.mulf %20, %29 : vector<64x128xf32>
    %c0_12 = arith.constant 0 : index
    %c0_13 = arith.constant 0 : index
    %31 = vector.load %arg4[%c0_12, %c0_13] : memref<64x128xf32, #tpu.memory_space<vmem>>, vector<64x128xf32>
    tpu.vector_store %arg4[%c0_12, %c0_13], %30 {strides = array<i32>} : memref<64x128xf32, #tpu.memory_space<vmem>>, vector<64x128xf32>,
    return
  }
  func.func @transform_0(%arg0: i32) -> (i32, i32) {
    %c0_i32 = arith.constant 0 : i32
    %c0_i32_0 = arith.constant 0 : i32
    return %arg0, %c0_i32 : i32, i32
  }
  func.func @transform_1(%arg0: i32) -> (i32, i32) {
    %c0_i32 = arith.constant 0 : i32
    %c0_i32_0 = arith.constant 0 : i32
    %c0_i32_1 = arith.constant 0 : i32
    return %c0_i32, %c0_i32_0 : i32, i32
  }
  func.func @transform_2(%arg0: i32) -> (i32, i32) {
    %c0_i32 = arith.constant 0 : i32
    %c0_i32_0 = arith.constant 0 : i32
    %c0_i32_1 = arith.constant 0 : i32
    return %c0_i32, %c0_i32_0 : i32, i32
  }
  func.func @transform_3(%arg0: i32) -> (i32, i32) {
    %c0_i32 = arith.constant 0 : i32
    %c0_i32_0 = arith.constant 0 : i32
    return %arg0, %c0_i32 : i32, i32
  }
}

</mosaic_0001>

<llo_original>
// kernel: tpu_custom_call.1
$region0: #{tpu_custom_call.1}
  #allocation0 [shape = 'u32[]', space=smem, size = 0x4, offset = 0x4, fixed_abs, tag = 'smem constant byte address 0x4 - core index']
  #allocation1 [shape = 'u32[72,128]{1,0:T(1,128)}', space=vmem, size = 0x9000, scoped, tag = 'internal scratch']
  %s0 = inlined_call_operand.vmem [shape: bf16[128,400], index: 0, kind: input, shape index: {}]
  %s1 = inlined_call_operand.hbm [shape: bf16[400,512], index: 1, kind: input, shape index: {}]
  %s2 = inlined_call_operand.vmem [shape: f32[256,128], index: 2, kind: input, shape index: {}]
  %s3 = inlined_call_operand.hbm [shape: f32[128,128], index: 3, kind: output, shape index: {}]
  %s4 = sld [smem:[#allocation0]]
  $region49: #{tpu_custom_call.1} parent=0
    _
  %s6 = ssub.s32 1, %s4
  %s7 = scalar_select 0, %s6, %s4
  $region1: #{tpu_custom_call.1} parent=0
    #allocation2 [shape = 'u8[409600]{0}', space=vmem, size = 0x64000, scoped, tag = 'input window, operand 1, single buffered']
    #allocation3 [shape = 's32[2]{0}', space=sflag, size = 0x8, scoped, tag = 'scoped memory for tpu_custom_call.1']
    #allocation4 [shape = 's32[2]{0}', space=sflag, size = 0x8, scoped, tag = 'scoped memory for tpu_custom_call.1']
    #allocation5 [shape = 'u8[65536]{0}', space=vmem, size = 0x10000, scoped, tag = 'output window, operand 0']
    %8 = vsyncpa [#allocation3], 0
    %9 = vsyncpa [#allocation4], 0
    %s10 = scalar_lea.sflag [#allocation4], 1
    %11 = vsyncpa %s10, 0
    loop: start=0, step=1, limit=4
    $region2: #{tpu_custom_call.1} parent=1 // loop_pre_header
      _
    $region3: #{tpu_custom_call.1} parent=1 // loop_header
      %s13 = sphi 0, %s17
      %p14 = scmp.ge.s32.totalorder %s13, 4
      %s23 = sphi 0, %s25
      %s26 = sphi 0, %s23
      %s27 = sphi 0, %s26
      %s43 = sphi 0, %s27
      %s47 = sphi 0, %s47
      %s49 = sphi 0, %s47
      %s50 = sphi 0, %s49
      %s64 = sphi 0, %s50
      %s68 = sphi 0, %s68
      %s70 = sphi 0, %s68
      %s71 = sphi 0, %s70
      %s85 = sphi 0, %s71
      %s91 = sphi 0, %s93
      %s94 = sphi 0, %s91
      %s95 = sphi 0, %s94
      %s111 = sphi 0, %s95
    $region4: #{tpu_custom_call.1} parent=1 // loop_header_branch
      %16 = sbr.rel (%p14) target = $region8
    $region5: #{tpu_custom_call.1} parent=1 // loop_body
      %s18 = ssub.s32 %s13, 1
      %s19 = ssub.s32 %s13, 2
      %s20 = sadd.s32 %s13, 1
      %s21 = ssub.s32 %s13, %s20
      %p22 = scmp.eq.s32.totalorder %s21, 0
      %s24 = sadd.s32 %s23, 1
      %s25 = scalar_select %p22, %s23, %s24
      %p28 = pneg %p22
      %p29 = scmp.eq.s32.totalorder %s13, 1
      %p30 = por %p28, %p29
      %p31 = scmp.ne.s32.totalorder %s23, %s26
      %p32 = scmp.eq.s32.totalorder %s13, 0
      %p33 = por %p31, %p32
      %p34 = scmp.ne.s32.totalorder %s23, %s26
      %p35 = scmp.eq.s32.totalorder %s18, 1
      %p36 = por %p34, %p35
      %p37 = scmp.ne.s32.totalorder %s26, %s27
      %p38 = scmp.eq.s32.totalorder %s18, 0
      %p39 = por %p37, %p38
      %p40 = scmp.ne.s32.totalorder %s26, %s27
      %p41 = scmp.eq.s32.totalorder %s19, 1
      %p42 = por %p40, %p41
      %p44 = scmp.ne.s32.totalorder %s27, %s43
      %p45 = scmp.eq.s32.totalorder %s19, 0
      %p46 = por %p44, %p45
      %s48 = sadd.s32 %s47, 1
      %p51 = scmp.eq.s32.totalorder %s13, 1
      %p52 = scmp.ne.s32.totalorder %s47, %s49
      %p53 = scmp.eq.s32.totalorder %s13, 0
      %p54 = por %p52, %p53
      %p55 = scmp.ne.s32.totalorder %s47, %s49
      %p56 = scmp.eq.s32.totalorder %s18, 1
      %p57 = por %p55, %p56
      %p58 = scmp.ne.s32.totalorder %s49, %s50
      %p59 = scmp.eq.s32.totalorder %s18, 0
      %p60 = por %p58, %p59
      %p61 = scmp.ne.s32.totalorder %s49, %s50
      %p62 = scmp.eq.s32.totalorder %s19, 1
      %p63 = por %p61, %p62
      %p65 = scmp.ne.s32.totalorder %s50, %s64
      %p66 = scmp.eq.s32.totalorder %s19, 0
      %p67 = por %p65, %p66
      %s69 = sadd.s32 %s68, 1
      %p72 = scmp.eq.s32.totalorder %s13, 1
      %p73 = scmp.ne.s32.totalorder %s68, %s70
      %p74 = scmp.eq.s32.totalorder %s13, 0
      %p75 = por %p73, %p74
      %p76 = scmp.ne.s32.totalorder %s68, %s70
      %p77 = scmp.eq.s32.totalorder %s18, 1
      %p78 = por %p76, %p77
      %p79 = scmp.ne.s32.totalorder %s70, %s71
      %p80 = scmp.eq.s32.totalorder %s18, 0
      %p81 = por %p79, %p80
      %p82 = scmp.ne.s32.totalorder %s70, %s71
      %p83 = scmp.eq.s32.totalorder %s19, 1
      %p84 = por %p82, %p83
      %p86 = scmp.ne.s32.totalorder %s71, %s85
      %p87 = scmp.eq.s32.totalorder %s19, 0
      %p88 = por %p86, %p87
      %s89 = ssub.s32 %s13, %s20
      %p90 = scmp.eq.s32.totalorder %s89, 0
      %s92 = sadd.s32 %s91, 1
      %s93 = scalar_select %p90, %s91, %s92
      %p96 = pneg %p90
      %p97 = scmp.eq.s32.totalorder %s13, 1
      %p98 = por %p96, %p97
      %p99 = scmp.ne.s32.totalorder %s91, %s94
      %p100 = scmp.eq.s32.totalorder %s13, 0
      %p101 = por %p99, %p100
      %p102 = scmp.ne.s32.totalorder %s91, %s94
      %p103 = scmp.eq.s32.totalorder %s18, 1
      %p104 = por %p102, %p103
      %p105 = scmp.ne.s32.totalorder %s94, %s95
      %p106 = scmp.eq.s32.totalorder %s18, 0
      %p107 = por %p105, %p106
      %p108 = scmp.ne.s32.totalorder %s94, %s95
      %p109 = scmp.eq.s32.totalorder %s19, 1
      %p110 = por %p108, %p109
      %p112 = scmp.ne.s32.totalorder %s95, %s111
      %p113 = scmp.eq.s32.totalorder %s19, 0
      %p114 = por %p112, %p113
      %p115 = scmp.le.s32.totalorder 1, %s13
      %p116 = scmp.lt.s32.totalorder %s13, 3
      %p117 = pnand %p115, %p116
      %p118 = pneg %p117
      // Predicated region
      $region9: #{tpu_custom_call.1} parent=5 // pred_check
        _
      $region10: #{tpu_custom_call.1} parent=5 // pred_check_branch
        %120 = sbr.rel (%p117) target = $region12
      $region11: #{tpu_custom_call.1} parent=5 // pred_region
        %s121 = ssub.s32 %s13, 1
        // Predicated region
        $region13: #{tpu_custom_call.1} parent=11 // pred_check
          %p122 = pneg %p60
        $region14: #{tpu_custom_call.1} parent=11 // pred_check_branch
          %124 = sbr.rel (%p122) target = $region16
        $region15: #{tpu_custom_call.1} parent=11 // pred_region
          %126 = vsyncadd [#allocation3], 0
          %s127 = sshll.u32 %s1, 4
          %s128 = int_to_ptr.hbm [resolvable:$true] %s127
          %s129 = sshll.u32 [#allocation2], 4
          %s130 = int_to_ptr.vmem [resolvable:$true] %s129
          %135 = dma.hbm_to_vmem [thread:$0]  %s128, 12800, %s130, [#allocation3], 256, 256, 16
        $region16: #{tpu_custom_call.1} parent=11 // pred_fallthru
          _
        // Predicated region
        $region17: #{tpu_custom_call.1} parent=11 // pred_check
          %p136 = pneg %p81
        $region18: #{tpu_custom_call.1} parent=11 // pred_check_branch
          %138 = sbr.rel (%p136) target = $region20
        $region19: #{tpu_custom_call.1} parent=11 // pred_region
          _
        $region20: #{tpu_custom_call.1} parent=11 // pred_fallthru
          _
      $region12: #{tpu_custom_call.1} parent=5 // pred_fallthru
        _
      %p139 = scmp.lt.s32.totalorder %s13, 2
      // Predicated region
      $region21: #{tpu_custom_call.1} parent=5 // pred_check
        %p140 = pneg %p139
      $region22: #{tpu_custom_call.1} parent=5 // pred_check_branch
        %142 = sbr.rel (%p140) target = $region24
      $region23: #{tpu_custom_call.1} parent=5 // pred_region
        // Predicated region
        $region25: #{tpu_custom_call.1} parent=23 // pred_check
          %p143 = pneg %p33
        $region26: #{tpu_custom_call.1} parent=23 // pred_check_branch
          %145 = sbr.rel (%p143) target = $region28
        $region27: #{tpu_custom_call.1} parent=23 // pred_region
          %s146 = smul.u32 8, %s13
          %p147 = scmp.lt.s32.totalorder %s146, 15
          %s148 = scalar_select %p147, %s146, 15
          %s149 = smul.addr %s148, 4
          %s150 = smul.addr %s149, 4
          %s151 = scalar_lea.vmem %s0, %s150
          %s152 = smul.u32 8, %s13
        $region28: #{tpu_custom_call.1} parent=23 // pred_fallthru
          _
      $region24: #{tpu_custom_call.1} parent=5 // pred_fallthru
        _
      %p153 = scmp.le.s32.totalorder 1, %s13
      %p154 = scmp.lt.s32.totalorder %s13, 3
      %p155 = pnand %p153, %p154
      %p156 = pneg %p155
      // Predicated region
      $region29: #{tpu_custom_call.1} parent=5 // pred_check
        _
      $region30: #{tpu_custom_call.1} parent=5 // pred_check_branch
        %158 = sbr.rel (%p155) target = $region32
      $region31: #{tpu_custom_call.1} parent=5 // pred_region
        %s159 = ssub.s32 %s13, 1
        // Predicated region
        $region33: #{tpu_custom_call.1} parent=31 // pred_check
          %p160 = pneg %p60
        $region34: #{tpu_custom_call.1} parent=31 // pred_check_branch
          %162 = sbr.rel (%p160) target = $region36
        $region35: #{tpu_custom_call.1} parent=31 // pred_region
          %164 = dma.done [#allocation3], 12800
        $region36: #{tpu_custom_call.1} parent=31 // pred_fallthru
          _
        %s165 = smul.u32 8, %s18
        %p166 = scmp.lt.s32.totalorder %s165, 15
        %s167 = scalar_select %p166, %s165, 15
        %s168 = smul.addr %s167, 4
        %s169 = smul.addr %s168, 4
        %s170 = scalar_lea.vmem %s0, %s169
        %p171 = pneg %p39
        %p172 = pneg %p36
        %p173 = pneg %p60
        %p174 = pneg %p57
        %p175 = pneg %p81
        %p176 = pneg %p78
        %p177 = pneg %p107
        %p178 = pneg %p104
        %s179 = sand.u32 %s94, 1
        %s180 = scalar_lea.sflag [#allocation4], %s179
        %s181 = sand.u32 %s94, 1
        %s182 = smul.addr %s181, 64
        %s183 = scalar_lea.vmem [#allocation5], %s182
        %s184 = smul.u32 8, %s18
        %p185 = scmp.lt.s32.totalorder %s184, 15
        %s186 = scalar_select %p185, %s184, 15
        %s187 = smul.addr %s186, 4
        %s188 = smul.addr %s187, 4
        %s189 = scalar_lea.vmem %s0, %s188
        %s190 = smul.u32 8, %s18
        %s191 = smul.u32 8, %s18
        %v193 = vld [vmem:[%s189] sm:$0xff]
        %v194 = vld [vmem:[%s189 + $0x8] sm:$0xff]
        %v195 = vld [vmem:[%s189 + $0x10] sm:$0xff]
        %v196 = vld [vmem:[%s189 + $0x18] sm:$0xff]
        %v197 = vld [vmem:[%s189 + $0x20] sm:$0xff]
        %v198 = vld [vmem:[%s189 + $0x28] sm:$0xff]
        %v199 = vld [vmem:[%s189 + $0x30] sm:$0xff]
        %v200 = vld [vmem:[%s189 + $0x38] sm:$0xff]
        %v201 = vld [vmem:[%s189 + $0x40] sm:$0xff]
        %v202 = vld [vmem:[%s189 + $0x48] sm:$0xff]
        %v203 = vld [vmem:[%s189 + $0x50] sm:$0xff]
        %v204 = vld [vmem:[%s189 + $0x58] sm:$0xff]
        %v205 = vld [vmem:[%s189 + $0x60] sm:$0xff]
        %v206 = vld [vmem:[%s189 + $0x68] sm:$0xff]
        %v207 = vld [vmem:[%s189 + $0x70] sm:$0xff]
        %v208 = vld [vmem:[%s189 + $0x78] sm:$0xff]
        %v209 = vld [vmem:[#allocation2] sm:$0xff]
        %v210 = vld [vmem:[#allocation2 + $0x8] sm:$0xff]
        %v211 = vld [vmem:[#allocation2 + $0x10] sm:$0xff]
        %v212 = vld [vmem:[#allocation2 + $0x18] sm:$0xff]
        %v213 = vld [vmem:[#allocation2 + $0x20] sm:$0xff]
        %v214 = vld [vmem:[#allocation2 + $0x28] sm:$0xff]
        %v215 = vld [vmem:[#allocation2 + $0x30] sm:$0xff]
        %v216 = vld [vmem:[#allocation2 + $0x38] sm:$0xff]
        %v217 = vld [vmem:[#allocation2 + $0x40] sm:$0xff]
        %v218 = vld [vmem:[#allocation2 + $0x48] sm:$0xff]
        %v219 = vld [vmem:[#allocation2 + $0x50] sm:$0xff]
        %v220 = vld [vmem:[#allocation2 + $0x58] sm:$0xff]
        %v221 = vld [vmem:[#allocation2 + $0x60] sm:$0xff]
        %v222 = vld [vmem:[#allocation2 + $0x68] sm:$0xff]
        %v223 = vld [vmem:[#allocation2 + $0x70] sm:$0xff]
        %v224 = vld [vmem:[#allocation2 + $0x78] sm:$0xff]
        %v225 = vld [vmem:[#allocation2 + $0x80] sm:$0xff]
        %v226 = vld [vmem:[#allocation2 + $0x88] sm:$0xff]
        %v227 = vld [vmem:[#allocation2 + $0x90] sm:$0xff]
        %v228 = vld [vmem:[#allocation2 + $0x98] sm:$0xff]
        %v229 = vld [vmem:[#allocation2 + $0xa0] sm:$0xff]
        %v230 = vld [vmem:[#allocation2 + $0xa8] sm:$0xff]
        %v231 = vld [vmem:[#allocation2 + $0xb0] sm:$0xff]
        %v232 = vld [vmem:[#allocation2 + $0xb8] sm:$0xff]
        %v233 = vld [vmem:[#allocation2 + $0xc0] sm:$0xff]
        %v234 = vld [vmem:[#allocation2 + $0xc8] sm:$0xff]
        %v235 = vld [vmem:[#allocation2 + $0xd0] sm:$0xff]
        %v236 = vld [vmem:[#allocation2 + $0xd8] sm:$0xff]
        %v237 = vld [vmem:[#allocation2 + $0xe0] sm:$0xff]
        %v238 = vld [vmem:[#allocation2 + $0xe8] sm:$0xff]
        %v239 = vld [vmem:[#allocation2 + $0xf0] sm:$0xff]
        %v240 = vld [vmem:[#allocation2 + $0xf8] sm:$0xff]
        %v241 = vld [vmem:[#allocation2 + $0x100] sm:$0xff]
        %v242 = vld [vmem:[#allocation2 + $0x108] sm:$0xff]
        %v243 = vld [vmem:[#allocation2 + $0x110] sm:$0xff]
        %v244 = vld [vmem:[#allocation2 + $0x118] sm:$0xff]
        %v245 = vld [vmem:[#allocation2 + $0x120] sm:$0xff]
        %v246 = vld [vmem:[#allocation2 + $0x128] sm:$0xff]
        %v247 = vld [vmem:[#allocation2 + $0x130] sm:$0xff]
        %v248 = vld [vmem:[#allocation2 + $0x138] sm:$0xff]
        %v249 = vld [vmem:[#allocation2 + $0x140] sm:$0xff]
        %v250 = vld [vmem:[#allocation2 + $0x148] sm:$0xff]
        %v251 = vld [vmem:[#allocation2 + $0x150] sm:$0xff]
        %v252 = vld [vmem:[#allocation2 + $0x158] sm:$0xff]
        %v253 = vld [vmem:[#allocation2 + $0x160] sm:$0xff]
        %v254 = vld [vmem:[#allocation2 + $0x168] sm:$0xff]
        %v255 = vld [vmem:[#allocation2 + $0x170] sm:$0xff]
        %v256 = vld [vmem:[#allocation2 + $0x178] sm:$0xff]
        %v257 = vld [vmem:[#allocation2 + $0x180] sm:$0xff]
        %v258 = vld [vmem:[#allocation2 + $0x188] sm:$0xff]
        %v259 = vld [vmem:[#allocation2 + $0x190] sm:$0xff]
        %v260 = vld [vmem:[#allocation2 + $0x198] sm:$0xff]
        %v261 = vld [vmem:[#allocation2 + $0x1a0] sm:$0xff]
        %v262 = vld [vmem:[#allocation2 + $0x1a8] sm:$0xff]
        %v263 = vld [vmem:[#allocation2 + $0x1b0] sm:$0xff]
        %v264 = vld [vmem:[#allocation2 + $0x1b8] sm:$0xff]
        %v265 = vld [vmem:[#allocation2 + $0x1c0] sm:$0xff]
        %v266 = vld [vmem:[#allocation2 + $0x1c8] sm:$0xff]
        %v267 = vld [vmem:[#allocation2 + $0x1d0] sm:$0xff]
        %v268 = vld [vmem:[#allocation2 + $0x1d8] sm:$0xff]
        %v269 = vld [vmem:[#allocation2 + $0x1e0] sm:$0xff]
        %v270 = vld [vmem:[#allocation2 + $0x1e8] sm:$0xff]
        %v271 = vld [vmem:[#allocation2 + $0x1f0] sm:$0xff]
        %v272 = vld [vmem:[#allocation2 + $0x1f8] sm:$0xff]
        %v273 = vld [vmem:[#allocation2 + $0x200] sm:$0xff]
        %v274 = vld [vmem:[#allocation2 + $0x208] sm:$0xff]
        %v275 = vld [vmem:[#allocation2 + $0x210] sm:$0xff]
        %v276 = vld [vmem:[#allocation2 + $0x218] sm:$0xff]
        %v277 = vld [vmem:[#allocation2 + $0x220] sm:$0xff]
        %v278 = vld [vmem:[#allocation2 + $0x228] sm:$0xff]
        %v279 = vld [vmem:[#allocation2 + $0x230] sm:$0xff]
        %v280 = vld [vmem:[#allocation2 + $0x238] sm:$0xff]
        %v281 = vld [vmem:[#allocation2 + $0x240] sm:$0xff]
        %v282 = vld [vmem:[#allocation2 + $0x248] sm:$0xff]
        %v283 = vld [vmem:[#allocation2 + $0x250] sm:$0xff]
        %v284 = vld [vmem:[#allocation2 + $0x258] sm:$0xff]
        %v285 = vld [vmem:[#allocation2 + $0x260] sm:$0xff]
        %v286 = vld [vmem:[#allocation2 + $0x268] sm:$0xff]
        %v287 = vld [vmem:[#allocation2 + $0x270] sm:$0xff]
        %v288 = vld [vmem:[#allocation2 + $0x278] sm:$0xff]
        %v289 = vld [vmem:[#allocation2 + $0x280] sm:$0xff]
        %v290 = vld [vmem:[#allocation2 + $0x288] sm:$0xff]
        %v291 = vld [vmem:[#allocation2 + $0x290] sm:$0xff]
        %v292 = vld [vmem:[#allocation2 + $0x298] sm:$0xff]
        %v293 = vld [vmem:[#allocation2 + $0x2a0] sm:$0xff]
        %v294 = vld [vmem:[#allocation2 + $0x2a8] sm:$0xff]
        %v295 = vld [vmem:[#allocation2 + $0x2b0] sm:$0xff]
        %v296 = vld [vmem:[#allocation2 + $0x2b8] sm:$0xff]
        %v297 = vld [vmem:[#allocation2 + $0x2c0] sm:$0xff]
        %v298 = vld [vmem:[#allocation2 + $0x2c8] sm:$0xff]
        %v299 = vld [vmem:[#allocation2 + $0x2d0] sm:$0xff]
        %v300 = vld [vmem:[#allocation2 + $0x2d8] sm:$0xff]
        %v301 = vld [vmem:[#allocation2 + $0x2e0] sm:$0xff]
        %v302 = vld [vmem:[#allocation2 + $0x2e8] sm:$0xff]
        %v303 = vld [vmem:[#allocation2 + $0x2f0] sm:$0xff]
        %v304 = vld [vmem:[#allocation2 + $0x2f8] sm:$0xff]
        %v305 = vld [vmem:[#allocation2 + $0x300] sm:$0xff]
        %v306 = vld [vmem:[#allocation2 + $0x308] sm:$0xff]
        %v307 = vld [vmem:[#allocation2 + $0x310] sm:$0xff]
        %v308 = vld [vmem:[#allocation2 + $0x318] sm:$0xff]
        %v325 = vunpack.c.l.b16 %v193
        %v326 = vunpack.c.h.b16 %v193
        %v327 = vunpack.c.l.b16 %v194
        %v328 = vunpack.c.h.b16 %v194
        %v329 = vunpack.c.l.b16 %v195
        %v330 = vunpack.c.h.b16 %v195
        %v331 = vunpack.c.l.b16 %v196
        %v332 = vunpack.c.h.b16 %v196
        %v333 = vunpack.c.l.b16 %v197
        %v334 = vunpack.c.h.b16 %v197
        %v335 = vunpack.c.l.b16 %v198
        %v336 = vunpack.c.h.b16 %v198
        %v337 = vunpack.c.l.b16 %v199
        %v338 = vunpack.c.h.b16 %v199
        %v339 = vunpack.c.l.b16 %v200
        %v340 = vunpack.c.h.b16 %v200
        %v341 = vunpack.c.l.b16 %v201
        %v342 = vunpack.c.h.b16 %v201
        %v343 = vunpack.c.l.b16 %v202
        %v344 = vunpack.c.h.b16 %v202
        %v345 = vunpack.c.l.b16 %v203
        %v346 = vunpack.c.h.b16 %v203
        %v347 = vunpack.c.l.b16 %v204
        %v348 = vunpack.c.h.b16 %v204
        %v349 = vunpack.c.l.b16 %v205
        %v350 = vunpack.c.h.b16 %v205
        %v351 = vunpack.c.l.b16 %v206
        %v352 = vunpack.c.h.b16 %v206
        %v353 = vunpack.c.l.b16 %v207
        %v354 = vunpack.c.h.b16 %v207
        %v355 = vunpack.c.l.b16 %v208
        %v356 = vunpack.c.h.b16 %v208
        %v357 = vpack.c.b16 %v329, %v325
        %v358 = vpack.c.b16 %v330, %v326
        %v359 = vpack.c.b16 %v331, %v327
        %v360 = vpack.c.b16 %v332, %v328
        %v361 = vpack.c.b16 %v337, %v333
        %v362 = vpack.c.b16 %v338, %v334
        %v363 = vpack.c.b16 %v339, %v335
        %v364 = vpack.c.b16 %v340, %v336
        %v365 = vpack.c.b16 %v345, %v341
        %v366 = vpack.c.b16 %v346, %v342
        %v367 = vpack.c.b16 %v347, %v343
        %v368 = vpack.c.b16 %v348, %v344
        %v369 = vpack.c.b16 %v353, %v349
        %v370 = vpack.c.b16 %v354, %v350
        %v371 = vpack.c.b16 %v355, %v351
        %v372 = vpack.c.b16 %v356, %v352
        %v485 = vunpack.c.l.b16 %v209
        %v486 = vunpack.c.h.b16 %v209
        %v487 = vunpack.c.l.b16 %v210
        %v488 = vunpack.c.h.b16 %v210
        %v489 = vunpack.c.l.b16 %v211
        %v490 = vunpack.c.h.b16 %v211
        %v491 = vunpack.c.l.b16 %v212
        %v492 = vunpack.c.h.b16 %v212
        %v493 = vunpack.c.l.b16 %v213
        %v494 = vunpack.c.h.b16 %v213
        %v495 = vunpack.c.l.b16 %v214
        %v496 = vunpack.c.h.b16 %v214
        %v497 = vunpack.c.l.b16 %v215
        %v498 = vunpack.c.h.b16 %v215
        %v499 = vunpack.c.l.b16 %v216
        %v500 = vunpack.c.h.b16 %v216
        %v501 = vunpack.c.l.b16 %v217
        %v502 = vunpack.c.h.b16 %v217
        %v503 = vunpack.c.l.b16 %v218
        %v504 = vunpack.c.h.b16 %v218
        %v505 = vunpack.c.l.b16 %v219
        %v506 = vunpack.c.h.b16 %v219
        %v507 = vunpack.c.l.b16 %v220
        %v508 = vunpack.c.h.b16 %v220
        %v509 = vunpack.c.l.b16 %v221
        %v510 = vunpack.c.h.b16 %v221
        %v511 = vunpack.c.l.b16 %v222
        %v512 = vunpack.c.h.b16 %v222
        %v513 = vunpack.c.l.b16 %v223
        %v514 = vunpack.c.h.b16 %v223
        %v515 = vunpack.c.l.b16 %v224
        %v516 = vunpack.c.h.b16 %v224
        %v517 = vunpack.c.l.b16 %v225
        %v518 = vunpack.c.h.b16 %v225
        %v519 = vunpack.c.l.b16 %v226
        %v520 = vunpack.c.h.b16 %v226
        %v521 = vunpack.c.l.b16 %v227
        %v522 = vunpack.c.h.b16 %v227
        %v523 = vunpack.c.l.b16 %v228
        %v524 = vunpack.c.h.b16 %v228
        %v525 = vunpack.c.l.b16 %v229
        %v526 = vunpack.c.h.b16 %v229
        %v527 = vunpack.c.l.b16 %v230
        %v528 = vunpack.c.h.b16 %v230
        %v529 = vunpack.c.l.b16 %v231
        %v530 = vunpack.c.h.b16 %v231
        %v531 = vunpack.c.l.b16 %v232
        %v532 = vunpack.c.h.b16 %v232
        %v533 = vunpack.c.l.b16 %v233
        %v534 = vunpack.c.h.b16 %v233
        %v535 = vunpack.c.l.b16 %v234
        %v536 = vunpack.c.h.b16 %v234
        %v537 = vunpack.c.l.b16 %v235
        %v538 = vunpack.c.h.b16 %v235
        %v539 = vunpack.c.l.b16 %v236
        %v540 = vunpack.c.h.b16 %v236
        %v541 = vunpack.c.l.b16 %v237
        %v542 = vunpack.c.h.b16 %v237
        %v543 = vunpack.c.l.b16 %v238
        %v544 = vunpack.c.h.b16 %v238
        %v545 = vunpack.c.l.b16 %v239
        %v546 = vunpack.c.h.b16 %v239
        %v547 = vunpack.c.l.b16 %v240
        %v548 = vunpack.c.h.b16 %v240
        %v549 = vunpack.c.l.b16 %v241
        %v550 = vunpack.c.h.b16 %v241
        %v551 = vunpack.c.l.b16 %v242
        %v552 = vunpack.c.h.b16 %v242
        %v553 = vunpack.c.l.b16 %v243
        %v554 = vunpack.c.h.b16 %v243
        %v555 = vunpack.c.l.b16 %v244
        %v556 = vunpack.c.h.b16 %v244
        %v557 = vunpack.c.l.b16 %v245
        %v558 = vunpack.c.h.b16 %v245
        %v559 = vunpack.c.l.b16 %v246
        %v560 = vunpack.c.h.b16 %v246
        %v561 = vunpack.c.l.b16 %v247
        %v562 = vunpack.c.h.b16 %v247
        %v563 = vunpack.c.l.b16 %v248
        %v564 = vunpack.c.h.b16 %v248
        %v565 = vunpack.c.l.b16 %v249
        %v566 = vunpack.c.h.b16 %v249
        %v567 = vunpack.c.l.b16 %v250
        %v568 = vunpack.c.h.b16 %v250
        %v569 = vunpack.c.l.b16 %v251
        %v570 = vunpack.c.h.b16 %v251
        %v571 = vunpack.c.l.b16 %v252
        %v572 = vunpack.c.h.b16 %v252
        %v573 = vunpack.c.l.b16 %v253
        %v574 = vunpack.c.h.b16 %v253
        %v575 = vunpack.c.l.b16 %v254
        %v576 = vunpack.c.h.b16 %v254
        %v577 = vunpack.c.l.b16 %v255
        %v578 = vunpack.c.h.b16 %v255
        %v579 = vunpack.c.l.b16 %v256
        %v580 = vunpack.c.h.b16 %v256
        %v581 = vunpack.c.l.b16 %v257
        %v582 = vunpack.c.h.b16 %v257
        %v583 = vunpack.c.l.b16 %v258
        %v584 = vunpack.c.h.b16 %v258
        %v585 = vunpack.c.l.b16 %v259
        %v586 = vunpack.c.h.b16 %v259
        %v587 = vunpack.c.l.b16 %v260
        %v588 = vunpack.c.h.b16 %v260
        %v589 = vunpack.c.l.b16 %v261
        %v590 = vunpack.c.h.b16 %v261
        %v591 = vunpack.c.l.b16 %v262
        %v592 = vunpack.c.h.b16 %v262
        %v593 = vunpack.c.l.b16 %v263
        %v594 = vunpack.c.h.b16 %v263
        %v595 = vunpack.c.l.b16 %v264
        %v596 = vunpack.c.h.b16 %v264
        %v597 = vunpack.c.l.b16 %v265
        %v598 = vunpack.c.h.b16 %v265
        %v599 = vunpack.c.l.b16 %v266
        %v600 = vunpack.c.h.b16 %v266
        %v601 = vunpack.c.l.b16 %v267
        %v602 = vunpack.c.h.b16 %v267
        %v603 = vunpack.c.l.b16 %v268
        %v604 = vunpack.c.h.b16 %v268
        %v605 = vunpack.c.l.b16 %v269
        %v606 = vunpack.c.h.b16 %v269
        %v607 = vunpack.c.l.b16 %v270
        %v608 = vunpack.c.h.b16 %v270
        %v609 = vunpack.c.l.b16 %v271
        %v610 = vunpack.c.h.b16 %v271
        %v611 = vunpack.c.l.b16 %v272
        %v612 = vunpack.c.h.b16 %v272
        %v613 = vunpack.c.l.b16 %v273
        %v614 = vunpack.c.h.b16 %v273
        %v615 = vunpack.c.l.b16 %v274
        %v616 = vunpack.c.h.b16 %v274
        %v617 = vunpack.c.l.b16 %v275
        %v618 = vunpack.c.h.b16 %v275
        %v619 = vunpack.c.l.b16 %v276
        %v620 = vunpack.c.h.b16 %v276
        %v621 = vunpack.c.l.b16 %v277
        %v622 = vunpack.c.h.b16 %v277
        %v623 = vunpack.c.l.b16 %v278
        %v624 = vunpack.c.h.b16 %v278
        %v625 = vunpack.c.l.b16 %v279
        %v626 = vunpack.c.h.b16 %v279
        %v627 = vunpack.c.l.b16 %v280
        %v628 = vunpack.c.h.b16 %v280
        %v629 = vunpack.c.l.b16 %v281
        %v630 = vunpack.c.h.b16 %v281
        %v631 = vunpack.c.l.b16 %v282
        %v632 = vunpack.c.h.b16 %v282
        %v633 = vunpack.c.l.b16 %v283
        %v634 = vunpack.c.h.b16 %v283
        %v635 = vunpack.c.l.b16 %v284
        %v636 = vunpack.c.h.b16 %v284
        %v637 = vunpack.c.l.b16 %v285
        %v638 = vunpack.c.h.b16 %v285
        %v639 = vunpack.c.l.b16 %v286
        %v640 = vunpack.c.h.b16 %v286
        %v641 = vunpack.c.l.b16 %v287
        %v642 = vunpack.c.h.b16 %v287
        %v643 = vunpack.c.l.b16 %v288
        %v644 = vunpack.c.h.b16 %v288
        %v645 = vunpack.c.l.b16 %v289
        %v646 = vunpack.c.h.b16 %v289
        %v647 = vunpack.c.l.b16 %v290
        %v648 = vunpack.c.h.b16 %v290
        %v649 = vunpack.c.l.b16 %v291
        %v650 = vunpack.c.h.b16 %v291
        %v651 = vunpack.c.l.b16 %v292
        %v652 = vunpack.c.h.b16 %v292
        %v653 = vunpack.c.l.b16 %v293
        %v654 = vunpack.c.h.b16 %v293
        %v655 = vunpack.c.l.b16 %v294
        %v656 = vunpack.c.h.b16 %v294
        %v657 = vunpack.c.l.b16 %v295
        %v658 = vunpack.c.h.b16 %v295
        %v659 = vunpack.c.l.b16 %v296
        %v660 = vunpack.c.h.b16 %v296
        %v661 = vunpack.c.l.b16 %v297
        %v662 = vunpack.c.h.b16 %v297
        %v663 = vunpack.c.l.b16 %v298
        %v664 = vunpack.c.h.b16 %v298
        %v665 = vunpack.c.l.b16 %v299
        %v666 = vunpack.c.h.b16 %v299
        %v667 = vunpack.c.l.b16 %v300
        %v668 = vunpack.c.h.b16 %v300
        %v669 = vunpack.c.l.b16 %v301
        %v670 = vunpack.c.h.b16 %v301
        %v671 = vunpack.c.l.b16 %v302
        %v672 = vunpack.c.h.b16 %v302
        %v673 = vunpack.c.l.b16 %v303
        %v674 = vunpack.c.h.b16 %v303
        %v675 = vunpack.c.l.b16 %v304
        %v676 = vunpack.c.h.b16 %v304
        %v677 = vunpack.c.l.b16 %v305
        %v678 = vunpack.c.h.b16 %v305
        %v679 = vunpack.c.l.b16 %v306
        %v680 = vunpack.c.h.b16 %v306
        %v681 = vunpack.c.l.b16 %v307
        %v682 = vunpack.c.h.b16 %v307
        %v683 = vunpack.c.l.b16 %v308
        %v684 = vunpack.c.h.b16 %v308
        %v685 = vpack.c.b16 %v489, %v485
        %v686 = vpack.c.b16 %v490, %v486
        %v687 = vpack.c.b16 %v491, %v487
        %v688 = vpack.c.b16 %v492, %v488
        %v689 = vpack.c.b16 %v497, %v493
        %v690 = vpack.c.b16 %v498, %v494
        %v691 = vpack.c.b16 %v499, %v495
        %v692 = vpack.c.b16 %v500, %v496
        %v693 = vpack.c.b16 %v505, %v501
        %v694 = vpack.c.b16 %v506, %v502
        %v695 = vpack.c.b16 %v507, %v503
        %v696 = vpack.c.b16 %v508, %v504
        %v697 = vpack.c.b16 %v513, %v509
        %v698 = vpack.c.b16 %v514, %v510
        %v699 = vpack.c.b16 %v515, %v511
        %v700 = vpack.c.b16 %v516, %v512
        %v701 = vpack.c.b16 %v521, %v517
        %v702 = vpack.c.b16 %v522, %v518
        %v703 = vpack.c.b16 %v523, %v519
        %v704 = vpack.c.b16 %v524, %v520
        %v705 = vpack.c.b16 %v529, %v525
        %v706 = vpack.c.b16 %v530, %v526
        %v707 = vpack.c.b16 %v531, %v527
        %v708 = vpack.c.b16 %v532, %v528
        %v709 = vpack.c.b16 %v537, %v533
        %v710 = vpack.c.b16 %v538, %v534
        %v711 = vpack.c.b16 %v539, %v535
        %v712 = vpack.c.b16 %v540, %v536
        %v713 = vpack.c.b16 %v545, %v541
        %v714 = vpack.c.b16 %v546, %v542
        %v715 = vpack.c.b16 %v547, %v543
        %v716 = vpack.c.b16 %v548, %v544
        %v717 = vpack.c.b16 %v553, %v549
        %v718 = vpack.c.b16 %v554, %v550
        %v719 = vpack.c.b16 %v555, %v551
        %v720 = vpack.c.b16 %v556, %v552
        %v721 = vpack.c.b16 %v561, %v557
        %v722 = vpack.c.b16 %v562, %v558
        %v723 = vpack.c.b16 %v563, %v559
        %v724 = vpack.c.b16 %v564, %v560
        %v725 = vpack.c.b16 %v569, %v565
        %v726 = vpack.c.b16 %v570, %v566
        %v727 = vpack.c.b16 %v571, %v567
        %v728 = vpack.c.b16 %v572, %v568
        %v729 = vpack.c.b16 %v577, %v573
        %v730 = vpack.c.b16 %v578, %v574
        %v731 = vpack.c.b16 %v579, %v575
        %v732 = vpack.c.b16 %v580, %v576
        %v733 = vpack.c.b16 %v585, %v581
        %v734 = vpack.c.b16 %v586, %v582
        %v735 = vpack.c.b16 %v587, %v583
        %v736 = vpack.c.b16 %v588, %v584
        %v737 = vpack.c.b16 %v593, %v589
        %v738 = vpack.c.b16 %v594, %v590
        %v739 = vpack.c.b16 %v595, %v591
        %v740 = vpack.c.b16 %v596, %v592
        %v741 = vpack.c.b16 %v601, %v597
        %v742 = vpack.c.b16 %v602, %v598
        %v743 = vpack.c.b16 %v603, %v599
        %v744 = vpack.c.b16 %v604, %v600
        %v745 = vpack.c.b16 %v609, %v605
        %v746 = vpack.c.b16 %v610, %v606
        %v747 = vpack.c.b16 %v611, %v607
        %v748 = vpack.c.b16 %v612, %v608
        %v749 = vpack.c.b16 %v617, %v613
        %v750 = vpack.c.b16 %v618, %v614
        %v751 = vpack.c.b16 %v619, %v615
        %v752 = vpack.c.b16 %v620, %v616
        %v753 = vpack.c.b16 %v625, %v621
        %v754 = vpack.c.b16 %v626, %v622
        %v755 = vpack.c.b16 %v627, %v623
        %v756 = vpack.c.b16 %v628, %v624
        %v757 = vpack.c.b16 %v633, %v629
        %v758 = vpack.c.b16 %v634, %v630
        %v759 = vpack.c.b16 %v635, %v631
        %v760 = vpack.c.b16 %v636, %v632
        %v761 = vpack.c.b16 %v641, %v637
        %v762 = vpack.c.b16 %v642, %v638
        %v763 = vpack.c.b16 %v643, %v639
        %v764 = vpack.c.b16 %v644, %v640
        %v765 = vpack.c.b16 %v649, %v645
        %v766 = vpack.c.b16 %v650, %v646
        %v767 = vpack.c.b16 %v651, %v647
        %v768 = vpack.c.b16 %v652, %v648
        %v769 = vpack.c.b16 %v657, %v653
        %v770 = vpack.c.b16 %v658, %v654
        %v771 = vpack.c.b16 %v659, %v655
        %v772 = vpack.c.b16 %v660, %v656
        %v773 = vpack.c.b16 %v665, %v661
        %v774 = vpack.c.b16 %v666, %v662
        %v775 = vpack.c.b16 %v667, %v663
        %v776 = vpack.c.b16 %v668, %v664
        %v777 = vpack.c.b16 %v673, %v669
        %v778 = vpack.c.b16 %v674, %v670
        %v779 = vpack.c.b16 %v675, %v671
        %v780 = vpack.c.b16 %v676, %v672
        %v781 = vpack.c.b16 %v681, %v677
        %v782 = vpack.c.b16 %v682, %v678
        %v783 = vpack.c.b16 %v683, %v679
        %v784 = vpack.c.b16 %v684, %v680
        %vm885 = vcmask 130048
        %v887 = vsel %vm885, %v360, 0
        %v890 = vsel %vm885, %v364, 0
        %v893 = vsel %vm885, %v368, 0
        %v896 = vsel %vm885, %v372, 0
        %898 = vmatpush.bf16.msra.mxu0 %v713
        %899 = vmatpush.bf16.msra.mxu0 %v709
        %900 = vmatpush.bf16.msra.mxu0 %v705
        %901 = vmatpush.bf16.msra.mxu0 %v701
        %902 = vmatpush.bf16.msra.mxu0 %v697
        %903 = vmatpush.bf16.msra.mxu0 %v693
        %904 = vmatpush.bf16.msra.mxu0 %v689
        %905 = vmatpush.bf16.msra.mxu0 %v685
        %906 = vmatmul.bf16.gmra.mxu0 %v357
        %v907 = vpop.f32.mrf.mxu0
        %v908 = vadd.f32 0.0, %v907
        %v909 = vpop.f32.mrf.mxu0
        %v910 = vadd.f32 0.0, %v909
        %911 = vmatmul.bf16.gmra.mxu0 %v361
        %v912 = vpop.f32.mrf.mxu0
        %v913 = vadd.f32 0.0, %v912
        %v914 = vpop.f32.mrf.mxu0
        %v915 = vadd.f32 0.0, %v914
        %916 = vmatmul.bf16.gmra.mxu0 %v365
        %v917 = vpop.f32.mrf.mxu0
        %v918 = vadd.f32 0.0, %v917
        %v919 = vpop.f32.mrf.mxu0
        %v920 = vadd.f32 0.0, %v919
        %921 = vmatmul.bf16.gmra.mxu0 %v369
        %v922 = vpop.f32.mrf.mxu0
        %v923 = vadd.f32 0.0, %v922
        %v924 = vpop.f32.mrf.mxu0
        %v925 = vadd.f32 0.0, %v924
        %926 = vdwg.mxu0
        %927 = vmatpush.bf16.msra.mxu0 %v745
        %928 = vmatpush.bf16.msra.mxu0 %v741
        %929 = vmatpush.bf16.msra.mxu0 %v737
        %930 = vmatpush.bf16.msra.mxu0 %v733
        %931 = vmatpush.bf16.msra.mxu0 %v729
        %932 = vmatpush.bf16.msra.mxu0 %v725
        %933 = vmatpush.bf16.msra.mxu0 %v721
        %934 = vmatpush.bf16.msra.mxu0 %v717
        %935 = vmatmul.bf16.gmra.mxu0 %v358
        %v936 = vpop.f32.mrf.mxu0
        %v937 = vadd.f32 %v908, %v936
        %v938 = vpop.f32.mrf.mxu0
        %v939 = vadd.f32 %v910, %v938
        %940 = vmatmul.bf16.gmra.mxu0 %v362
        %v941 = vpop.f32.mrf.mxu0
        %v942 = vadd.f32 %v913, %v941
        %v943 = vpop.f32.mrf.mxu0
        %v944 = vadd.f32 %v915, %v943
        %945 = vmatmul.bf16.gmra.mxu0 %v366
        %v946 = vpop.f32.mrf.mxu0
        %v947 = vadd.f32 %v918, %v946
        %v948 = vpop.f32.mrf.mxu0
        %v949 = vadd.f32 %v920, %v948
        %950 = vmatmul.bf16.gmra.mxu0 %v370
        %v951 = vpop.f32.mrf.mxu0
        %v952 = vadd.f32 %v923, %v951
        %v953 = vpop.f32.mrf.mxu0
        %v954 = vadd.f32 %v925, %v953
        %955 = vdwg.mxu0
        %956 = vmatpush.bf16.msra.mxu0 %v777
        %957 = vmatpush.bf16.msra.mxu0 %v773
        %958 = vmatpush.bf16.msra.mxu0 %v769
        %959 = vmatpush.bf16.msra.mxu0 %v765
        %960 = vmatpush.bf16.msra.mxu0 %v761
        %961 = vmatpush.bf16.msra.mxu0 %v757
        %962 = vmatpush.bf16.msra.mxu0 %v753
        %963 = vmatpush.bf16.msra.mxu0 %v749
        %964 = vmatmul.bf16.gmra.mxu0 %v359
        %v965 = vpop.f32.mrf.mxu0
        %v966 = vadd.f32 %v937, %v965
        %v967 = vpop.f32.mrf.mxu0
        %v968 = vadd.f32 %v939, %v967
        %969 = vmatmul.bf16.gmra.mxu0 %v363
        %v970 = vpop.f32.mrf.mxu0
        %v971 = vadd.f32 %v942, %v970
        %v972 = vpop.f32.mrf.mxu0
        %v973 = vadd.f32 %v944, %v972
        %974 = vmatmul.bf16.gmra.mxu0 %v367
        %v975 = vpop.f32.mrf.mxu0
        %v976 = vadd.f32 %v947, %v975
        %v977 = vpop.f32.mrf.mxu0
        %v978 = vadd.f32 %v949, %v977
        %979 = vmatmul.bf16.gmra.mxu0 %v371
        %v980 = vpop.f32.mrf.mxu0
        %v981 = vadd.f32 %v952, %v980
        %v982 = vpop.f32.mrf.mxu0
        %v983 = vadd.f32 %v954, %v982
        %984 = vdwg.mxu0
        %985 = vmatpush.bf16.msra.mxu0 0
        %986 = vmatpush.bf16.msra.mxu0 0
        %987 = vmatpush.bf16.msra.mxu0 0
        %988 = vmatpush.bf16.msra.mxu0 0
        %989 = vmatpush.bf16.msra.mxu0 0
        %990 = vmatpush.bf16.msra.mxu0 0
        %991 = vmatpush.bf16.msra.mxu0 0
        %992 = vmatpush.bf16.msra.mxu0 %v781
        %993 = vmatmul.bf16.gmra.mxu0 %v887
        %v994 = vpop.f32.mrf.mxu0
        %v995 = vadd.f32 %v966, %v994
        %v996 = vpop.f32.mrf.mxu0
        %v997 = vadd.f32 %v968, %v996
        %998 = vmatmul.bf16.gmra.mxu0 %v890
        %v999 = vpop.f32.mrf.mxu0
        %v1000 = vadd.f32 %v971, %v999
        %v1001 = vpop.f32.mrf.mxu0
        %v1002 = vadd.f32 %v973, %v1001
        %1003 = vmatmul.bf16.gmra.mxu0 %v893
        %v1004 = vpop.f32.mrf.mxu0
        %v1005 = vadd.f32 %v976, %v1004
        %v1006 = vpop.f32.mrf.mxu0
        %v1007 = vadd.f32 %v978, %v1006
        %1008 = vmatmul.bf16.gmra.mxu0 %v896
        %v1009 = vpop.f32.mrf.mxu0
        %v1010 = vadd.f32 %v981, %v1009
        %v1011 = vpop.f32.mrf.mxu0
        %v1012 = vadd.f32 %v983, %v1011
        %1013 = vdwg.mxu0
        %1014 = vmatpush.bf16.msra.mxu0 %v714
        %1015 = vmatpush.bf16.msra.mxu0 %v710
        %1016 = vmatpush.bf16.msra.mxu0 %v706
        %1017 = vmatpush.bf16.msra.mxu0 %v702
        %1018 = vmatpush.bf16.msra.mxu0 %v698
        %1019 = vmatpush.bf16.msra.mxu0 %v694
        %1020 = vmatpush.bf16.msra.mxu0 %v690
        %1021 = vmatpush.bf16.msra.mxu0 %v686
        %1022 = vmatmul.bf16.gmra.mxu0 %v357
        %v1023 = vpop.f32.mrf.mxu0
        %v1024 = vadd.f32 0.0, %v1023
        %v1025 = vpop.f32.mrf.mxu0
        %v1026 = vadd.f32 0.0, %v1025
        %1027 = vmatmul.bf16.gmra.mxu0 %v361
        %v1028 = vpop.f32.mrf.mxu0
        %v1029 = vadd.f32 0.0, %v1028
        %v1030 = vpop.f32.mrf.mxu0
        %v1031 = vadd.f32 0.0, %v1030
        %1032 = vmatmul.bf16.gmra.mxu0 %v365
        %v1033 = vpop.f32.mrf.mxu0
        %v1034 = vadd.f32 0.0, %v1033
        %v1035 = vpop.f32.mrf.mxu0
        %v1036 = vadd.f32 0.0, %v1035
        %1037 = vmatmul.bf16.gmra.mxu0 %v369
        %v1038 = vpop.f32.mrf.mxu0
        %v1039 = vadd.f32 0.0, %v1038
        %v1040 = vpop.f32.mrf.mxu0
        %v1041 = vadd.f32 0.0, %v1040
        %1042 = vdwg.mxu0
        %1043 = vmatpush.bf16.msra.mxu0 %v746
        %1044 = vmatpush.bf16.msra.mxu0 %v742
        %1045 = vmatpush.bf16.msra.mxu0 %v738
        %1046 = vmatpush.bf16.msra.mxu0 %v734
        %1047 = vmatpush.bf16.msra.mxu0 %v730
        %1048 = vmatpush.bf16.msra.mxu0 %v726
        %1049 = vmatpush.bf16.msra.mxu0 %v722
        %1050 = vmatpush.bf16.msra.mxu0 %v718
        %1051 = vmatmul.bf16.gmra.mxu0 %v358
        %v1052 = vpop.f32.mrf.mxu0
        %v1053 = vadd.f32 %v1024, %v1052
        %v1054 = vpop.f32.mrf.mxu0
        %v1055 = vadd.f32 %v1026, %v1054
        %1056 = vmatmul.bf16.gmra.mxu0 %v362
        %v1057 = vpop.f32.mrf.mxu0
        %v1058 = vadd.f32 %v1029, %v1057
        %v1059 = vpop.f32.mrf.mxu0
        %v1060 = vadd.f32 %v1031, %v1059
        %1061 = vmatmul.bf16.gmra.mxu0 %v366
        %v1062 = vpop.f32.mrf.mxu0
        %v1063 = vadd.f32 %v1034, %v1062
        %v1064 = vpop.f32.mrf.mxu0
        %v1065 = vadd.f32 %v1036, %v1064
        %1066 = vmatmul.bf16.gmra.mxu0 %v370
        %v1067 = vpop.f32.mrf.mxu0
        %v1068 = vadd.f32 %v1039, %v1067
        %v1069 = vpop.f32.mrf.mxu0
        %v1070 = vadd.f32 %v1041, %v1069
        %1071 = vdwg.mxu0
        %1072 = vmatpush.bf16.msra.mxu0 %v778
        %1073 = vmatpush.bf16.msra.mxu0 %v774
        %1074 = vmatpush.bf16.msra.mxu0 %v770
        %1075 = vmatpush.bf16.msra.mxu0 %v766
        %1076 = vmatpush.bf16.msra.mxu0 %v762
        %1077 = vmatpush.bf16.msra.mxu0 %v758
        %1078 = vmatpush.bf16.msra.mxu0 %v754
        %1079 = vmatpush.bf16.msra.mxu0 %v750
        %1080 = vmatmul.bf16.gmra.mxu0 %v359
        %v1081 = vpop.f32.mrf.mxu0
        %v1082 = vadd.f32 %v1053, %v1081
        %v1083 = vpop.f32.mrf.mxu0
        %v1084 = vadd.f32 %v1055, %v1083
        %1085 = vmatmul.bf16.gmra.mxu0 %v363
        %v1086 = vpop.f32.mrf.mxu0
        %v1087 = vadd.f32 %v1058, %v1086
        %v1088 = vpop.f32.mrf.mxu0
        %v1089 = vadd.f32 %v1060, %v1088
        %1090 = vmatmul.bf16.gmra.mxu0 %v367
        %v1091 = vpop.f32.mrf.mxu0
        %v1092 = vadd.f32 %v1063, %v1091
        %v1093 = vpop.f32.mrf.mxu0
        %v1094 = vadd.f32 %v1065, %v1093
        %1095 = vmatmul.bf16.gmra.mxu0 %v371
        %v1096 = vpop.f32.mrf.mxu0
        %v1097 = vadd.f32 %v1068, %v1096
        %v1098 = vpop.f32.mrf.mxu0
        %v1099 = vadd.f32 %v1070, %v1098
        %1100 = vdwg.mxu0
        %1101 = vmatpush.bf16.msra.mxu0 0
        %1102 = vmatpush.bf16.msra.mxu0 0
        %1103 = vmatpush.bf16.msra.mxu0 0
        %1104 = vmatpush.bf16.msra.mxu0 0
        %1105 = vmatpush.bf16.msra.mxu0 0
        %1106 = vmatpush.bf16.msra.mxu0 0
        %1107 = vmatpush.bf16.msra.mxu0 0
        %1108 = vmatpush.bf16.msra.mxu0 %v782
        %1109 = vmatmul.bf16.gmra.mxu0 %v887
        %v1110 = vpop.f32.mrf.mxu0
        %v1111 = vadd.f32 %v1082, %v1110
        %v1112 = vpop.f32.mrf.mxu0
        %v1113 = vadd.f32 %v1084, %v1112
        %1114 = vmatmul.bf16.gmra.mxu0 %v890
        %v1115 = vpop.f32.mrf.mxu0
        %v1116 = vadd.f32 %v1087, %v1115
        %v1117 = vpop.f32.mrf.mxu0
        %v1118 = vadd.f32 %v1089, %v1117
        %1119 = vmatmul.bf16.gmra.mxu0 %v893
        %v1120 = vpop.f32.mrf.mxu0
        %v1121 = vadd.f32 %v1092, %v1120
        %v1122 = vpop.f32.mrf.mxu0
        %v1123 = vadd.f32 %v1094, %v1122
        %1124 = vmatmul.bf16.gmra.mxu0 %v896
        %v1125 = vpop.f32.mrf.mxu0
        %v1126 = vadd.f32 %v1097, %v1125
        %v1127 = vpop.f32.mrf.mxu0
        %v1128 = vadd.f32 %v1099, %v1127
        %1129 = vdwg.mxu0
        %1130 = vmatpush.bf16.msra.mxu0 %v715
        %1131 = vmatpush.bf16.msra.mxu0 %v711
        %1132 = vmatpush.bf16.msra.mxu0 %v707
        %1133 = vmatpush.bf16.msra.mxu0 %v703
        %1134 = vmatpush.bf16.msra.mxu0 %v699
        %1135 = vmatpush.bf16.msra.mxu0 %v695
        %1136 = vmatpush.bf16.msra.mxu0 %v691
        %1137 = vmatpush.bf16.msra.mxu0 %v687
        %1138 = vmatmul.bf16.gmra.mxu0 %v357
        %v1139 = vpop.f32.mrf.mxu0
        %v1140 = vadd.f32 0.0, %v1139
        %v1141 = vpop.f32.mrf.mxu0
        %v1142 = vadd.f32 0.0, %v1141
        %1143 = vmatmul.bf16.gmra.mxu0 %v361
        %v1144 = vpop.f32.mrf.mxu0
        %v1145 = vadd.f32 0.0, %v1144
        %v1146 = vpop.f32.mrf.mxu0
        %v1147 = vadd.f32 0.0, %v1146
        %1148 = vmatmul.bf16.gmra.mxu0 %v365
        %v1149 = vpop.f32.mrf.mxu0
        %v1150 = vadd.f32 0.0, %v1149
        %v1151 = vpop.f32.mrf.mxu0
        %v1152 = vadd.f32 0.0, %v1151
        %1153 = vmatmul.bf16.gmra.mxu0 %v369
        %v1154 = vpop.f32.mrf.mxu0
        %v1155 = vadd.f32 0.0, %v1154
        %v1156 = vpop.f32.mrf.mxu0
        %v1157 = vadd.f32 0.0, %v1156
        %1158 = vdwg.mxu0
        %1159 = vmatpush.bf16.msra.mxu0 %v747
        %1160 = vmatpush.bf16.msra.mxu0 %v743
        %1161 = vmatpush.bf16.msra.mxu0 %v739
        %1162 = vmatpush.bf16.msra.mxu0 %v735
        %1163 = vmatpush.bf16.msra.mxu0 %v731
        %1164 = vmatpush.bf16.msra.mxu0 %v727
        %1165 = vmatpush.bf16.msra.mxu0 %v723
        %1166 = vmatpush.bf16.msra.mxu0 %v719
        %1167 = vmatmul.bf16.gmra.mxu0 %v358
        %v1168 = vpop.f32.mrf.mxu0
        %v1169 = vadd.f32 %v1140, %v1168
        %v1170 = vpop.f32.mrf.mxu0
        %v1171 = vadd.f32 %v1142, %v1170
        %1172 = vmatmul.bf16.gmra.mxu0 %v362
        %v1173 = vpop.f32.mrf.mxu0
        %v1174 = vadd.f32 %v1145, %v1173
        %v1175 = vpop.f32.mrf.mxu0
        %v1176 = vadd.f32 %v1147, %v1175
        %1177 = vmatmul.bf16.gmra.mxu0 %v366
        %v1178 = vpop.f32.mrf.mxu0
        %v1179 = vadd.f32 %v1150, %v1178
        %v1180 = vpop.f32.mrf.mxu0
        %v1181 = vadd.f32 %v1152, %v1180
        %1182 = vmatmul.bf16.gmra.mxu0 %v370
        %v1183 = vpop.f32.mrf.mxu0
        %v1184 = vadd.f32 %v1155, %v1183
        %v1185 = vpop.f32.mrf.mxu0
        %v1186 = vadd.f32 %v1157, %v1185
        %1187 = vdwg.mxu0
        %1188 = vmatpush.bf16.msra.mxu0 %v779
        %1189 = vmatpush.bf16.msra.mxu0 %v775
        %1190 = vmatpush.bf16.msra.mxu0 %v771
        %1191 = vmatpush.bf16.msra.mxu0 %v767
        %1192 = vmatpush.bf16.msra.mxu0 %v763
        %1193 = vmatpush.bf16.msra.mxu0 %v759
        %1194 = vmatpush.bf16.msra.mxu0 %v755
        %1195 = vmatpush.bf16.msra.mxu0 %v751
        %1196 = vmatmul.bf16.gmra.mxu0 %v359
        %v1197 = vpop.f32.mrf.mxu0
        %v1198 = vadd.f32 %v1169, %v1197
        %v1199 = vpop.f32.mrf.mxu0
        %v1200 = vadd.f32 %v1171, %v1199
        %1201 = vmatmul.bf16.gmra.mxu0 %v363
        %v1202 = vpop.f32.mrf.mxu0
        %v1203 = vadd.f32 %v1174, %v1202
        %v1204 = vpop.f32.mrf.mxu0
        %v1205 = vadd.f32 %v1176, %v1204
        %1206 = vmatmul.bf16.gmra.mxu0 %v367
        %v1207 = vpop.f32.mrf.mxu0
        %v1208 = vadd.f32 %v1179, %v1207
        %v1209 = vpop.f32.mrf.mxu0
        %v1210 = vadd.f32 %v1181, %v1209
        %1211 = vmatmul.bf16.gmra.mxu0 %v371
        %v1212 = vpop.f32.mrf.mxu0
        %v1213 = vadd.f32 %v1184, %v1212
        %v1214 = vpop.f32.mrf.mxu0
        %v1215 = vadd.f32 %v1186, %v1214
        %1216 = vdwg.mxu0
        %1217 = vmatpush.bf16.msra.mxu0 0
        %1218 = vmatpush.bf16.msra.mxu0 0
        %1219 = vmatpush.bf16.msra.mxu0 0
        %1220 = vmatpush.bf16.msra.mxu0 0
        %1221 = vmatpush.bf16.msra.mxu0 0
        %1222 = vmatpush.bf16.msra.mxu0 0
        %1223 = vmatpush.bf16.msra.mxu0 0
        %1224 = vmatpush.bf16.msra.mxu0 %v783
        %1225 = vmatmul.bf16.gmra.mxu0 %v887
        %v1226 = vpop.f32.mrf.mxu0
        %v1227 = vadd.f32 %v1198, %v1226
        %v1228 = vpop.f32.mrf.mxu0
        %v1229 = vadd.f32 %v1200, %v1228
        %1230 = vmatmul.bf16.gmra.mxu0 %v890
        %v1231 = vpop.f32.mrf.mxu0
        %v1232 = vadd.f32 %v1203, %v1231
        %v1233 = vpop.f32.mrf.mxu0
        %v1234 = vadd.f32 %v1205, %v1233
        %1235 = vmatmul.bf16.gmra.mxu0 %v893
        %v1236 = vpop.f32.mrf.mxu0
        %v1237 = vadd.f32 %v1208, %v1236
        %v1238 = vpop.f32.mrf.mxu0
        %v1239 = vadd.f32 %v1210, %v1238
        %1240 = vmatmul.bf16.gmra.mxu0 %v896
        %v1241 = vpop.f32.mrf.mxu0
        %v1242 = vadd.f32 %v1213, %v1241
        %v1243 = vpop.f32.mrf.mxu0
        %v1244 = vadd.f32 %v1215, %v1243
        %1245 = vdwg.mxu0
        %1246 = vmatpush.bf16.msra.mxu0 %v716
        %1247 = vmatpush.bf16.msra.mxu0 %v712
        %1248 = vmatpush.bf16.msra.mxu0 %v708
        %1249 = vmatpush.bf16.msra.mxu0 %v704
        %1250 = vmatpush.bf16.msra.mxu0 %v700
        %1251 = vmatpush.bf16.msra.mxu0 %v696
        %1252 = vmatpush.bf16.msra.mxu0 %v692
        %1253 = vmatpush.bf16.msra.mxu0 %v688
        %1254 = vmatmul.bf16.gmra.mxu0 %v357
        %v1255 = vpop.f32.mrf.mxu0
        %v1256 = vadd.f32 0.0, %v1255
        %v1257 = vpop.f32.mrf.mxu0
        %v1258 = vadd.f32 0.0, %v1257
        %1259 = vmatmul.bf16.gmra.mxu0 %v361
        %v1260 = vpop.f32.mrf.mxu0
        %v1261 = vadd.f32 0.0, %v1260
        %v1262 = vpop.f32.mrf.mxu0
        %v1263 = vadd.f32 0.0, %v1262
        %1264 = vmatmul.bf16.gmra.mxu0 %v365
        %v1265 = vpop.f32.mrf.mxu0
        %v1266 = vadd.f32 0.0, %v1265
        %v1267 = vpop.f32.mrf.mxu0
        %v1268 = vadd.f32 0.0, %v1267
        %1269 = vmatmul.bf16.gmra.mxu0 %v369
        %v1270 = vpop.f32.mrf.mxu0
        %v1271 = vadd.f32 0.0, %v1270
        %v1272 = vpop.f32.mrf.mxu0
        %v1273 = vadd.f32 0.0, %v1272
        %1274 = vdwg.mxu0
        %1275 = vmatpush.bf16.msra.mxu0 %v748
        %1276 = vmatpush.bf16.msra.mxu0 %v744
        %1277 = vmatpush.bf16.msra.mxu0 %v740
        %1278 = vmatpush.bf16.msra.mxu0 %v736
        %1279 = vmatpush.bf16.msra.mxu0 %v732
        %1280 = vmatpush.bf16.msra.mxu0 %v728
        %1281 = vmatpush.bf16.msra.mxu0 %v724
        %1282 = vmatpush.bf16.msra.mxu0 %v720
        %1283 = vmatmul.bf16.gmra.mxu0 %v358
        %v1284 = vpop.f32.mrf.mxu0
        %v1285 = vadd.f32 %v1256, %v1284
        %v1286 = vpop.f32.mrf.mxu0
        %v1287 = vadd.f32 %v1258, %v1286
        %1288 = vmatmul.bf16.gmra.mxu0 %v362
        %v1289 = vpop.f32.mrf.mxu0
        %v1290 = vadd.f32 %v1261, %v1289
        %v1291 = vpop.f32.mrf.mxu0
        %v1292 = vadd.f32 %v1263, %v1291
        %1293 = vmatmul.bf16.gmra.mxu0 %v366
        %v1294 = vpop.f32.mrf.mxu0
        %v1295 = vadd.f32 %v1266, %v1294
        %v1296 = vpop.f32.mrf.mxu0
        %v1297 = vadd.f32 %v1268, %v1296
        %1298 = vmatmul.bf16.gmra.mxu0 %v370
        %v1299 = vpop.f32.mrf.mxu0
        %v1300 = vadd.f32 %v1271, %v1299
        %v1301 = vpop.f32.mrf.mxu0
        %v1302 = vadd.f32 %v1273, %v1301
        %1303 = vdwg.mxu0
        %1304 = vmatpush.bf16.msra.mxu0 %v780
        %1305 = vmatpush.bf16.msra.mxu0 %v776
        %1306 = vmatpush.bf16.msra.mxu0 %v772
        %1307 = vmatpush.bf16.msra.mxu0 %v768
        %1308 = vmatpush.bf16.msra.mxu0 %v764
        %1309 = vmatpush.bf16.msra.mxu0 %v760
        %1310 = vmatpush.bf16.msra.mxu0 %v756
        %1311 = vmatpush.bf16.msra.mxu0 %v752
        %1312 = vmatmul.bf16.gmra.mxu0 %v359
        %v1313 = vpop.f32.mrf.mxu0
        %v1314 = vadd.f32 %v1285, %v1313
        %v1315 = vpop.f32.mrf.mxu0
        %v1316 = vadd.f32 %v1287, %v1315
        %1317 = vmatmul.bf16.gmra.mxu0 %v363
        %v1318 = vpop.f32.mrf.mxu0
        %v1319 = vadd.f32 %v1290, %v1318
        %v1320 = vpop.f32.mrf.mxu0
        %v1321 = vadd.f32 %v1292, %v1320
        %1322 = vmatmul.bf16.gmra.mxu0 %v367
        %v1323 = vpop.f32.mrf.mxu0
        %v1324 = vadd.f32 %v1295, %v1323
        %v1325 = vpop.f32.mrf.mxu0
        %v1326 = vadd.f32 %v1297, %v1325
        %1327 = vmatmul.bf16.gmra.mxu0 %v371
        %v1328 = vpop.f32.mrf.mxu0
        %v1329 = vadd.f32 %v1300, %v1328
        %v1330 = vpop.f32.mrf.mxu0
        %v1331 = vadd.f32 %v1302, %v1330
        %1332 = vdwg.mxu0
        %1333 = vmatpush.bf16.msra.mxu0 0
        %1334 = vmatpush.bf16.msra.mxu0 0
        %1335 = vmatpush.bf16.msra.mxu0 0
        %1336 = vmatpush.bf16.msra.mxu0 0
        %1337 = vmatpush.bf16.msra.mxu0 0
        %1338 = vmatpush.bf16.msra.mxu0 0
        %1339 = vmatpush.bf16.msra.mxu0 0
        %1340 = vmatpush.bf16.msra.mxu0 %v784
        %1341 = vmatmul.bf16.gmra.mxu0 %v887
        %v1342 = vpop.f32.mrf.mxu0
        %v1343 = vadd.f32 %v1314, %v1342
        %v1344 = vpop.f32.mrf.mxu0
        %v1345 = vadd.f32 %v1316, %v1344
        %1346 = vmatmul.bf16.gmra.mxu0 %v890
        %v1347 = vpop.f32.mrf.mxu0
        %v1348 = vadd.f32 %v1319, %v1347
        %v1349 = vpop.f32.mrf.mxu0
        %v1350 = vadd.f32 %v1321, %v1349
        %1351 = vmatmul.bf16.gmra.mxu0 %v893
        %v1352 = vpop.f32.mrf.mxu0
        %v1353 = vadd.f32 %v1324, %v1352
        %v1354 = vpop.f32.mrf.mxu0
        %v1355 = vadd.f32 %v1326, %v1354
        %1356 = vmatmul.bf16.gmra.mxu0 %v896
        %v1357 = vpop.f32.mrf.mxu0
        %v1358 = vadd.f32 %v1329, %v1357
        %v1359 = vpop.f32.mrf.mxu0
        %v1360 = vadd.f32 %v1331, %v1359
        %1361 = vdwg.mxu0
        %v1362 = vmul.f32 %v995, %v995
        %v1363 = vmul.f32 %v1111, %v1111
        %v1364 = vmul.f32 %v997, %v997
        %v1365 = vmul.f32 %v1113, %v1113
        %v1366 = vmul.f32 %v1000, %v1000
        %v1367 = vmul.f32 %v1116, %v1116
        %v1368 = vmul.f32 %v1002, %v1002
        %v1369 = vmul.f32 %v1118, %v1118
        %v1370 = vmul.f32 %v1005, %v1005
        %v1371 = vmul.f32 %v1121, %v1121
        %v1372 = vmul.f32 %v1007, %v1007
        %v1373 = vmul.f32 %v1123, %v1123
        %v1374 = vmul.f32 %v1010, %v1010
        %v1375 = vmul.f32 %v1126, %v1126
        %v1376 = vmul.f32 %v1012, %v1012
        %v1377 = vmul.f32 %v1128, %v1128
        %v1378 = vmul.f32 %v1227, %v1227
        %v1379 = vmul.f32 %v1343, %v1343
        %v1380 = vmul.f32 %v1229, %v1229
        %v1381 = vmul.f32 %v1345, %v1345
        %v1382 = vmul.f32 %v1232, %v1232
        %v1383 = vmul.f32 %v1348, %v1348
        %v1384 = vmul.f32 %v1234, %v1234
        %v1385 = vmul.f32 %v1350, %v1350
        %v1386 = vmul.f32 %v1237, %v1237
        %v1387 = vmul.f32 %v1353, %v1353
        %v1388 = vmul.f32 %v1239, %v1239
        %v1389 = vmul.f32 %v1355, %v1355
        %v1390 = vmul.f32 %v1242, %v1242
        %v1391 = vmul.f32 %v1358, %v1358
        %v1392 = vmul.f32 %v1244, %v1244
        %v1393 = vmul.f32 %v1360, %v1360
        %v1394 = vadd.f32 %v1362, %v1378
        %v1395 = vadd.f32 %v1363, %v1379
        %v1396 = vadd.f32 %v1364, %v1380
        %v1397 = vadd.f32 %v1365, %v1381
        %v1398 = vadd.f32 %v1366, %v1382
        %v1399 = vadd.f32 %v1367, %v1383
        %v1400 = vadd.f32 %v1368, %v1384
        %v1401 = vadd.f32 %v1369, %v1385
        %v1402 = vadd.f32 %v1370, %v1386
        %v1403 = vadd.f32 %v1371, %v1387
        %v1404 = vadd.f32 %v1372, %v1388
        %v1405 = vadd.f32 %v1373, %v1389
        %v1406 = vadd.f32 %v1374, %v1390
        %v1407 = vadd.f32 %v1375, %v1391
        %v1408 = vadd.f32 %v1376, %v1392
        %v1409 = vadd.f32 %v1377, %v1393
        %v1410 = vld [vmem:[%s2] sm:$0xff]
        %v1411 = vld [vmem:[%s2 + $0x8] sm:$0xff]
        %v1412 = vld [vmem:[%s2 + $0x10] sm:$0xff]
        %v1413 = vld [vmem:[%s2 + $0x18] sm:$0xff]
        %v1414 = vld [vmem:[%s2 + $0x20] sm:$0xff]
        %v1415 = vld [vmem:[%s2 + $0x28] sm:$0xff]
        %v1416 = vld [vmem:[%s2 + $0x30] sm:$0xff]
        %v1417 = vld [vmem:[%s2 + $0x38] sm:$0xff]
        %v1418 = vld [vmem:[%s2 + $0x40] sm:$0xff]
        %v1419 = vld [vmem:[%s2 + $0x48] sm:$0xff]
        %v1420 = vld [vmem:[%s2 + $0x50] sm:$0xff]
        %v1421 = vld [vmem:[%s2 + $0x58] sm:$0xff]
        %v1422 = vld [vmem:[%s2 + $0x60] sm:$0xff]
        %v1423 = vld [vmem:[%s2 + $0x68] sm:$0xff]
        %v1424 = vld [vmem:[%s2 + $0x70] sm:$0xff]
        %v1425 = vld [vmem:[%s2 + $0x78] sm:$0xff]
        %v1426 = vld [vmem:[%s2 + $0x80] sm:$0xff]
        %v1427 = vld [vmem:[%s2 + $0x88] sm:$0xff]
        %v1428 = vld [vmem:[%s2 + $0x90] sm:$0xff]
        %v1429 = vld [vmem:[%s2 + $0x98] sm:$0xff]
        %v1430 = vld [vmem:[%s2 + $0xa0] sm:$0xff]
        %v1431 = vld [vmem:[%s2 + $0xa8] sm:$0xff]
        %v1432 = vld [vmem:[%s2 + $0xb0] sm:$0xff]
        %v1433 = vld [vmem:[%s2 + $0xb8] sm:$0xff]
        %v1434 = vld [vmem:[%s2 + $0xc0] sm:$0xff]
        %v1435 = vld [vmem:[%s2 + $0xc8] sm:$0xff]
        %v1436 = vld [vmem:[%s2 + $0xd0] sm:$0xff]
        %v1437 = vld [vmem:[%s2 + $0xd8] sm:$0xff]
        %v1438 = vld [vmem:[%s2 + $0xe0] sm:$0xff]
        %v1439 = vld [vmem:[%s2 + $0xe8] sm:$0xff]
        %v1440 = vld [vmem:[%s2 + $0xf0] sm:$0xff]
        %v1441 = vld [vmem:[%s2 + $0xf8] sm:$0xff]
        %1442 = vmatpush.msra.mxu0 %v1425
        %1443 = vmatpush.msra.mxu0 %v1424
        %1444 = vmatpush.msra.mxu0 %v1423
        %1445 = vmatpush.msra.mxu0 %v1422
        %1446 = vmatpush.msra.mxu0 %v1421
        %1447 = vmatpush.msra.mxu0 %v1420
        %1448 = vmatpush.msra.mxu0 %v1419
        %1449 = vmatpush.msra.mxu0 %v1418
        %1450 = vmatpush.msra.mxu0 %v1417
        %1451 = vmatpush.msra.mxu0 %v1416
        %1452 = vmatpush.msra.mxu0 %v1415
        %1453 = vmatpush.msra.mxu0 %v1414
        %1454 = vmatpush.msra.mxu0 %v1413
        %1455 = vmatpush.msra.mxu0 %v1412
        %1456 = vmatpush.msra.mxu0 %v1411
        %1457 = vmatpush.msra.mxu0 %v1410
        %1458 = vmatmul.f32.gmra.mxu0 %v1394
        %v1459 = vpop.f32.mrf.mxu0
        %v1460 = vadd.f32 0.0, %v1459
        %1461 = vmatmul.f32.gmra.mxu0 %v1396
        %v1462 = vpop.f32.mrf.mxu0
        %v1463 = vadd.f32 0.0, %v1462
        %1464 = vmatmul.f32.gmra.mxu0 %v1398
        %v1465 = vpop.f32.mrf.mxu0
        %v1466 = vadd.f32 0.0, %v1465
        %1467 = vmatmul.f32.gmra.mxu0 %v1400
        %v1468 = vpop.f32.mrf.mxu0
        %v1469 = vadd.f32 0.0, %v1468
        %1470 = vmatmul.f32.gmra.mxu0 %v1402
        %v1471 = vpop.f32.mrf.mxu0
        %v1472 = vadd.f32 0.0, %v1471
        %1473 = vmatmul.f32.gmra.mxu0 %v1404
        %v1474 = vpop.f32.mrf.mxu0
        %v1475 = vadd.f32 0.0, %v1474
        %1476 = vmatmul.f32.gmra.mxu0 %v1406
        %v1477 = vpop.f32.mrf.mxu0
        %v1478 = vadd.f32 0.0, %v1477
        %1479 = vmatmul.f32.gmra.mxu0 %v1408
        %v1480 = vpop.f32.mrf.mxu0
        %v1481 = vadd.f32 0.0, %v1480
        %1482 = vdwg.mxu0
        %1483 = vmatpush.msra.mxu0 %v1441
        %1484 = vmatpush.msra.mxu0 %v1440
        %1485 = vmatpush.msra.mxu0 %v1439
        %1486 = vmatpush.msra.mxu0 %v1438
        %1487 = vmatpush.msra.mxu0 %v1437
        %1488 = vmatpush.msra.mxu0 %v1436
        %1489 = vmatpush.msra.mxu0 %v1435
        %1490 = vmatpush.msra.mxu0 %v1434
        %1491 = vmatpush.msra.mxu0 %v1433
        %1492 = vmatpush.msra.mxu0 %v1432
        %1493 = vmatpush.msra.mxu0 %v1431
        %1494 = vmatpush.msra.mxu0 %v1430
        %1495 = vmatpush.msra.mxu0 %v1429
        %1496 = vmatpush.msra.mxu0 %v1428
        %1497 = vmatpush.msra.mxu0 %v1427
        %1498 = vmatpush.msra.mxu0 %v1426
        %1499 = vmatmul.f32.gmra.mxu0 %v1395
        %v1500 = vpop.f32.mrf.mxu0
        %v1501 = vadd.f32 %v1460, %v1500
        %1502 = vmatmul.f32.gmra.mxu0 %v1397
        %v1503 = vpop.f32.mrf.mxu0
        %v1504 = vadd.f32 %v1463, %v1503
        %1505 = vmatmul.f32.gmra.mxu0 %v1399
        %v1506 = vpop.f32.mrf.mxu0
        %v1507 = vadd.f32 %v1466, %v1506
        %1508 = vmatmul.f32.gmra.mxu0 %v1401
        %v1509 = vpop.f32.mrf.mxu0
        %v1510 = vadd.f32 %v1469, %v1509
        %1511 = vmatmul.f32.gmra.mxu0 %v1403
        %v1512 = vpop.f32.mrf.mxu0
        %v1513 = vadd.f32 %v1472, %v1512
        %1514 = vmatmul.f32.gmra.mxu0 %v1405
        %v1515 = vpop.f32.mrf.mxu0
        %v1516 = vadd.f32 %v1475, %v1515
        %1517 = vmatmul.f32.gmra.mxu0 %v1407
        %v1518 = vpop.f32.mrf.mxu0
        %v1519 = vadd.f32 %v1478, %v1518
        %1520 = vmatmul.f32.gmra.mxu0 %v1409
        %v1521 = vpop.f32.mrf.mxu0
        %v1522 = vadd.f32 %v1481, %v1521
        %1523 = vdwg.mxu0
        %1524 = vadd.xlane.f32.xlu0 %v1501
        %v1525 = vpop.xlane.xlu0 %1524
        %1526 = vadd.xlane.f32.xlu0 %v1504
        %v1527 = vpop.xlane.xlu0 %1526
        %1528 = vadd.xlane.f32.xlu0 %v1507
        %v1529 = vpop.xlane.xlu0 %1528
        %1530 = vadd.xlane.f32.xlu0 %v1510
        %v1531 = vpop.xlane.xlu0 %1530
        %1532 = vadd.xlane.f32.xlu0 %v1513
        %v1533 = vpop.xlane.xlu0 %1532
        %1534 = vadd.xlane.f32.xlu0 %v1516
        %v1535 = vpop.xlane.xlu0 %1534
        %1536 = vadd.xlane.f32.xlu0 %v1519
        %v1537 = vpop.xlane.xlu0 %1536
        %1538 = vadd.xlane.f32.xlu0 %v1522
        %v1539 = vpop.xlane.xlu0 %1538
        %v1540 = vmul.f32 %v1525, 0.0125
        %v1541 = vmul.f32 %v1527, 0.0125
        %v1542 = vmul.f32 %v1529, 0.0125
        %v1543 = vmul.f32 %v1531, 0.0125
        %v1544 = vmul.f32 %v1533, 0.0125
        %v1545 = vmul.f32 %v1535, 0.0125
        %v1546 = vmul.f32 %v1537, 0.0125
        %v1547 = vmul.f32 %v1539, 0.0125
        %v1548 = vlaneseq
        %v1549 = vand.u32 %v1548, 127
        %vm1550 = vcmp.lt.s32.totalorder %v1549, 80
        %v1551 = vsub.f32 %v1501, %v1540
        %v1552 = vsub.f32 %v1504, %v1541
        %v1553 = vsub.f32 %v1507, %v1542
        %v1554 = vsub.f32 %v1510, %v1543
        %v1555 = vsub.f32 %v1513, %v1544
        %v1556 = vsub.f32 %v1516, %v1545
        %v1557 = vsub.f32 %v1519, %v1546
        %v1558 = vsub.f32 %v1522, %v1547
        %v1559 = vsel %vm1550, %v1551, 0.0
        %v1560 = vsel %vm1550, %v1552, 0.0
        %v1561 = vsel %vm1550, %v1553, 0.0
        %v1562 = vsel %vm1550, %v1554, 0.0
        %v1563 = vsel %vm1550, %v1555, 0.0
        %v1564 = vsel %vm1550, %v1556, 0.0
        %v1565 = vsel %vm1550, %v1557, 0.0
        %v1566 = vsel %vm1550, %v1558, 0.0
        %v1567 = vmul.f32 %v1559, %v1559
        %v1568 = vmul.f32 %v1560, %v1560
        %v1569 = vmul.f32 %v1561, %v1561
        %v1570 = vmul.f32 %v1562, %v1562
        %v1571 = vmul.f32 %v1563, %v1563
        %v1572 = vmul.f32 %v1564, %v1564
        %v1573 = vmul.f32 %v1565, %v1565
        %v1574 = vmul.f32 %v1566, %v1566
        %1575 = vadd.xlane.f32.xlu0 %v1567
        %v1576 = vpop.xlane.xlu0 %1575
        %1577 = vadd.xlane.f32.xlu0 %v1568
        %v1578 = vpop.xlane.xlu0 %1577
        %1579 = vadd.xlane.f32.xlu0 %v1569
        %v1580 = vpop.xlane.xlu0 %1579
        %1581 = vadd.xlane.f32.xlu0 %v1570
        %v1582 = vpop.xlane.xlu0 %1581
        %1583 = vadd.xlane.f32.xlu0 %v1571
        %v1584 = vpop.xlane.xlu0 %1583
        %1585 = vadd.xlane.f32.xlu0 %v1572
        %v1586 = vpop.xlane.xlu0 %1585
        %1587 = vadd.xlane.f32.xlu0 %v1573
        %v1588 = vpop.xlane.xlu0 %1587
        %1589 = vadd.xlane.f32.xlu0 %v1574
        %v1590 = vpop.xlane.xlu0 %1589
        %v1591 = vmul.f32 %v1576, 0.0125
        %v1592 = vmul.f32 %v1578, 0.0125
        %v1593 = vmul.f32 %v1580, 0.0125
        %v1594 = vmul.f32 %v1582, 0.0125
        %v1595 = vmul.f32 %v1584, 0.0125
        %v1596 = vmul.f32 %v1586, 0.0125
        %v1597 = vmul.f32 %v1588, 0.0125
        %v1598 = vmul.f32 %v1590, 0.0125
        %v1599 = vadd.f32 %v1591, 1e-05
        %v1600 = vadd.f32 %v1592, 1e-05
        %v1601 = vadd.f32 %v1593, 1e-05
        %v1602 = vadd.f32 %v1594, 1e-05
        %v1603 = vadd.f32 %v1595, 1e-05
        %v1604 = vadd.f32 %v1596, 1e-05
        %v1605 = vadd.f32 %v1597, 1e-05
        %v1606 = vadd.f32 %v1598, 1e-05
        %v1607 = vrsqrt.pop %v1599
        %v1608 = vmul.f32 %v1607, %v1599
        %v1609 = vmul.f32 %v1608, %v1607
        %v1610 = vmul.f32 0.5, %v1609
        %v1611 = vsub.f32 1.5, %v1610
        %v1612 = vmul.f32 %v1607, %v1611
        %vm1613 = vweird.f32 %v1599
        %vm1614 = vweird.f32 %v1607
        %vm1615 = vmor %vm1613, %vm1614
        %v1616 = vsel %vm1615, %v1607, %v1612
        %v1617 = vrsqrt.pop %v1600
        %v1618 = vmul.f32 %v1617, %v1600
        %v1619 = vmul.f32 %v1618, %v1617
        %v1620 = vmul.f32 0.5, %v1619
        %v1621 = vsub.f32 1.5, %v1620
        %v1622 = vmul.f32 %v1617, %v1621
        %vm1623 = vweird.f32 %v1600
        %vm1624 = vweird.f32 %v1617
        %vm1625 = vmor %vm1623, %vm1624
        %v1626 = vsel %vm1625, %v1617, %v1622
        %v1627 = vrsqrt.pop %v1601
        %v1628 = vmul.f32 %v1627, %v1601
        %v1629 = vmul.f32 %v1628, %v1627
        %v1630 = vmul.f32 0.5, %v1629
        %v1631 = vsub.f32 1.5, %v1630
        %v1632 = vmul.f32 %v1627, %v1631
        %vm1633 = vweird.f32 %v1601
        %vm1634 = vweird.f32 %v1627
        %vm1635 = vmor %vm1633, %vm1634
        %v1636 = vsel %vm1635, %v1627, %v1632
        %v1637 = vrsqrt.pop %v1602
        %v1638 = vmul.f32 %v1637, %v1602
        %v1639 = vmul.f32 %v1638, %v1637
        %v1640 = vmul.f32 0.5, %v1639
        %v1641 = vsub.f32 1.5, %v1640
        %v1642 = vmul.f32 %v1637, %v1641
        %vm1643 = vweird.f32 %v1602
        %vm1644 = vweird.f32 %v1637
        %vm1645 = vmor %vm1643, %vm1644
        %v1646 = vsel %vm1645, %v1637, %v1642
        %v1647 = vrsqrt.pop %v1603
        %v1648 = vmul.f32 %v1647, %v1603
        %v1649 = vmul.f32 %v1648, %v1647
        %v1650 = vmul.f32 0.5, %v1649
        %v1651 = vsub.f32 1.5, %v1650
        %v1652 = vmul.f32 %v1647, %v1651
        %vm1653 = vweird.f32 %v1603
        %vm1654 = vweird.f32 %v1647
        %vm1655 = vmor %vm1653, %vm1654
        %v1656 = vsel %vm1655, %v1647, %v1652
        %v1657 = vrsqrt.pop %v1604
        %v1658 = vmul.f32 %v1657, %v1604
        %v1659 = vmul.f32 %v1658, %v1657
        %v1660 = vmul.f32 0.5, %v1659
        %v1661 = vsub.f32 1.5, %v1660
        %v1662 = vmul.f32 %v1657, %v1661
        %vm1663 = vweird.f32 %v1604
        %vm1664 = vweird.f32 %v1657
        %vm1665 = vmor %vm1663, %vm1664
        %v1666 = vsel %vm1665, %v1657, %v1662
        %v1667 = vrsqrt.pop %v1605
        %v1668 = vmul.f32 %v1667, %v1605
        %v1669 = vmul.f32 %v1668, %v1667
        %v1670 = vmul.f32 0.5, %v1669
        %v1671 = vsub.f32 1.5, %v1670
        %v1672 = vmul.f32 %v1667, %v1671
        %vm1673 = vweird.f32 %v1605
        %vm1674 = vweird.f32 %v1667
        %vm1675 = vmor %vm1673, %vm1674
        %v1676 = vsel %vm1675, %v1667, %v1672
        %v1677 = vrsqrt.pop %v1606
        %v1678 = vmul.f32 %v1677, %v1606
        %v1679 = vmul.f32 %v1678, %v1677
        %v1680 = vmul.f32 0.5, %v1679
        %v1681 = vsub.f32 1.5, %v1680
        %v1682 = vmul.f32 %v1677, %v1681
        %vm1683 = vweird.f32 %v1606
        %vm1684 = vweird.f32 %v1677
        %vm1685 = vmor %vm1683, %vm1684
        %v1686 = vsel %vm1685, %v1677, %v1682
        %v1687 = vmul.f32 %v1559, %v1616
        %v1688 = vmul.f32 %v1560, %v1626
        %v1689 = vmul.f32 %v1561, %v1636
        %v1690 = vmul.f32 %v1562, %v1646
        %v1691 = vmul.f32 %v1563, %v1656
        %v1692 = vmul.f32 %v1564, %v1666
        %v1693 = vmul.f32 %v1565, %v1676
        %v1694 = vmul.f32 %v1566, %v1686
        %1695 = vst [vmem:[%s183] sm:$0xff] %v1687
        %1696 = vst [vmem:[%s183 + $0x8] sm:$0xff] %v1688
        %1697 = vst [vmem:[%s183 + $0x10] sm:$0xff] %v1689
        %1698 = vst [vmem:[%s183 + $0x18] sm:$0xff] %v1690
        %1699 = vst [vmem:[%s183 + $0x20] sm:$0xff] %v1691
        %1700 = vst [vmem:[%s183 + $0x28] sm:$0xff] %v1692
        %1701 = vst [vmem:[%s183 + $0x30] sm:$0xff] %v1693
        %1702 = vst [vmem:[%s183 + $0x38] sm:$0xff] %v1694
        %s1703 = sand.u32 %s94, 1
        %s1704 = scalar_lea.sflag [#allocation4], %s1703
        %s1705 = sand.u32 %s94, 1
        %s1706 = smul.addr %s1705, 64
        %s1707 = scalar_lea.vmem [#allocation5], %s1706
        // Predicated region
        $region37: #{tpu_custom_call.1} parent=31 // pred_check
          %p1708 = pneg %p104
        $region38: #{tpu_custom_call.1} parent=31 // pred_check_branch
          %1710 = sbr.rel (%p1708) target = $region40
        $region39: #{tpu_custom_call.1} parent=31 // pred_region
          %s1711 = smul.u32 8, %s18
          %1713 = vsyncadd %s1704, 0
          %s1714 = smul.addr %s1711, 8
          %s1715 = scalar_lea.hbm %s3, %s1714
          %s1716 = sshll.u32 %s1707, 4
          %s1717 = int_to_ptr.vmem [resolvable:$true] %s1716
          %s1718 = sshll.u32 %s1715, 4
          %s1719 = int_to_ptr.hbm [resolvable:$true] %s1718
          %1724 = dma.vmem_to_hbm [thread:$0]  %s1717, 1024, %s1719, %s1704, 128, 128, 8
        $region40: #{tpu_custom_call.1} parent=31 // pred_fallthru
          _
      $region32: #{tpu_custom_call.1} parent=5 // pred_fallthru
        _
      %p1725 = scmp.le.s32.totalorder 2, %s13
      // Predicated region
      $region41: #{tpu_custom_call.1} parent=5 // pred_check
        %p1726 = pneg %p1725
      $region42: #{tpu_custom_call.1} parent=5 // pred_check_branch
        %1728 = sbr.rel (%p1726) target = $region44
      $region43: #{tpu_custom_call.1} parent=5 // pred_region
        %s1729 = ssub.s32 %s13, 2
        // Predicated region
        $region45: #{tpu_custom_call.1} parent=43 // pred_check
          %p1730 = pneg %p110
        $region46: #{tpu_custom_call.1} parent=43 // pred_check_branch
          %1732 = sbr.rel (%p1730) target = $region48
        $region47: #{tpu_custom_call.1} parent=43 // pred_region
          %s1733 = sand.u32 %s95, 1
          %s1734 = scalar_lea.sflag [#allocation4], %s1733
          %s1735 = sand.u32 %s95, 1
          %s1736 = smul.addr %s1735, 64
          %s1737 = scalar_lea.vmem [#allocation5], %s1736
          %1739 = dma.done %s1734, 1024
        $region48: #{tpu_custom_call.1} parent=43 // pred_fallthru
          _
      $region44: #{tpu_custom_call.1} parent=5 // pred_fallthru
        _
    $region6: #{tpu_custom_call.1} parent=1 // loop_footer
      %s17 = sadd.s32 1, %s13
    $region7: #{tpu_custom_call.1} parent=1 // loop_footer_branch
      %12 = sbr.rel target = $region3
    $region8: #{tpu_custom_call.1} parent=1 // loop_exit
      _
    %1740 = vsyncpa [#allocation3], 1
    %s1741 = scalar_lea.sflag [#allocation3], 1
    %1742 = vsyncpa %s1741, 1
    %1743 = vsyncpa [#allocation4], 1
    %s1744 = scalar_lea.sflag [#allocation4], 1
    %1745 = vsyncpa %s1744, 1

</llo_original>
